<compile_context>
chip_gen: v7x
topology: tpu7x:2x2x1
jax: 0.10.0
libtpu: 0.0.40
codegen_flags: <defaults>
</compile_context>

<pallas_src>
import functools

import jax
import jax.numpy as jnp
import numpy as np
from jax.experimental import pallas as pl
from jax.experimental.pallas import tpu as pltpu

EPS = 1e-5


# ------------------------------- fused kernel ------------------------------ #

def _resblock_kernel(x_ref, w1_ref, w2_ref, aff_ref, o_ref, slab_ref,
                     *, N, C, H, W, E2):
    """Fused ResBlock for all N instances in one invocation.

    Layout: rows = (n, c) on sublanes (N*C = 8), flat un-padded spatial on
    lanes (H*W = 256 = 2x128).
      x_ref    : (N*C, H*W)      input image, row n*C+c
      w*_ref   : (N*C, 9*C)      per-tap weight columns, col (ky*3+kx)*C+ci
      aff_ref  : (N*C, 4)        [gamma1, beta1, gamma2, beta2] columns
      o_ref    : (N*C, H*W)      output
      slab_ref : (C*N*C, LBUF)   zero-extended channel-broadcast slab
                                 (row block ci holds channel ci of the current
                                 conv input, broadcast to all output rows)
    """
    NC = N * C
    HW = H * W
    inv_hw = 1.0 / float(HW)

    # Column-edge validity masks (destination-indexed), one per dx-group.
    col = jax.lax.broadcasted_iota(jnp.int32, (1, HW), 1) % W
    cm_l = (col >= 1).astype(jnp.float32)          # dx = -1 taps: x == 0 invalid
    cm_r = (col <= W - 2).astype(jnp.float32)      # dx = +1 taps: x == W-1 invalid

    x = x_ref[...]                                 # (NC, HW)
    w1 = w1_ref[...]                               # (NC, 9*C), vreg-resident
    w2 = w2_ref[...]
    aff = aff_ref[...]                             # (NC, 4)

    def fill_slab(img):
        # slab rows [ci*NC + n*C + co] <- img row (n*C + ci), for all co.
        for ci in range(C):
            for n in range(N):
                row = img[n * C + ci:n * C + ci + 1, :]              # (1, HW)
                slab_ref[ci * NC + n * C:ci * NC + (n + 1) * C,
                         E2:E2 + HW] = jnp.broadcast_to(row, (C, HW))

    def conv3x3(w_cols):
        # Accumulate per dx-group so the column-edge fix-up costs 2 multiplies
        # total instead of one per tap.  Row-edge taps need no fix-up: their
        # sources fall in the zero extension of the slab (== conv zero pad).
        accs = [jnp.zeros((NC, HW), jnp.float32) for _ in range(3)]
        for dy in (-1, 0, 1):
            for dx in (-1, 0, 1):
                t = (dy + 1) * 3 + (dx + 1)
                off = dy * W + dx
                a = accs[dx + 1]
                for ci in range(C):
                    xs = slab_ref[ci * NC:(ci + 1) * NC,
                                  E2 + off:E2 + off + HW]            # (NC, HW)
                    wc = w_cols[:, t * C + ci:t * C + ci + 1]        # (NC, 1)
                    a = a + wc * xs
                accs[dx + 1] = a
        return accs[1] + accs[0] * cm_l + accs[2] * cm_r

    def inorm(acc, g, b):
        # single-pass stats: biased var = E[x^2] - mean^2 (f32 accumulation)
        s1 = jnp.sum(acc, axis=-1, keepdims=True)
        s2 = jnp.sum(acc * acc, axis=-1, keepdims=True)
        mean = s1 * inv_hw
        var = s2 * inv_hw - mean * mean
        sc = g * jax.lax.rsqrt(var + EPS)
        return acc * sc + (b - mean * sc)

    # Zero the slab once; the extension lanes stay zero for BOTH convs.
    slab_ref[...] = jnp.zeros_like(slab_ref)

    # ---- conv1 + IN + ReLU -------------------------------------------------
    fill_slab(x)
    h = jnp.maximum(inorm(conv3x3(w1), aff[:, 0:1], aff[:, 1:2]), 0.0)

    # ---- conv2 + IN + residual (slab reused, intermediate never leaves VMEM)
    fill_slab(h)
    o_ref[...] = x + inorm(conv3x3(w2), aff[:, 2:3], aff[:, 3:4])


# -------------------------------- wrapper ----------------------------------- #

def resblock_forward(x_nchw, w1, g1, b1, w2, g2, b2):
    """ResBlock forward. Input/output are NCHW float32, matching PyTorch."""
    N, C, H, W = x_nchw.shape
    assert w1.shape == (C, C, 3, 3) and w2.shape == (C, C, 3, 3)
    NC, HW = N * C, H * W

    E2 = 128                                   # left zero extension (>= W+1)
    assert W + 1 <= E2
    LBUF = E2 + ((HW + W + 1 + 127) // 128) * 128   # right margin >= W+1

    # free dim-collapse (no HBM copy), row order n*C + c
    x2d = x_nchw.reshape(NC, HW).astype(jnp.float32)

    def to_cols(w):
        # (Cout, Cin, 3, 3) -> (NC, 9*C): row n*C+co, col (ky*3+kx)*C + ci
        wc = jnp.transpose(w, (0, 2, 3, 1)).reshape(C, 9 * C)
        return jnp.tile(wc, (N, 1)).astype(jnp.float32)

    aff = jnp.stack([jnp.tile(g1, N), jnp.tile(b1, N),
                     jnp.tile(g2, N), jnp.tile(b2, N)],
                    axis=1).astype(jnp.float32)                   # (NC, 4)

    kern = functools.partial(_resblock_kernel, N=N, C=C, H=H, W=W, E2=E2)
    out2d = pl.pallas_call(
        kern,
        out_shape=jax.ShapeDtypeStruct((NC, HW), jnp.float32),
        grid=(1,),
        in_specs=[
            pl.BlockSpec((NC, HW), lambda i: (0, 0)),             # x
            pl.BlockSpec((NC, 9 * C), lambda i: (0, 0)),          # conv1 taps
            pl.BlockSpec((NC, 9 * C), lambda i: (0, 0)),          # conv2 taps
            pl.BlockSpec((NC, 4), lambda i: (0, 0)),              # affine params
        ],
        out_specs=pl.BlockSpec((NC, HW), lambda i: (0, 0)),
        scratch_shapes=[pltpu.VMEM((C * NC, LBUF), jnp.float32)],
        compiler_params=pltpu.CompilerParams(
            dimension_semantics=("arbitrary",)),
        # TODO(synk): at production sizes add a spatial "parallel" grid axis so
        # both v7x TensorCores are fed; not useful at this demo size.
    )(x2d, to_cols(w1), to_cols(w2), aff)

    return out2d.reshape(N, C, H, W)


# ------------------------------ pure-JAX reference -------------------------- #

def _ref_forward(x_nchw, w1, g1, b1, w2, g2, b2):
    def conv(x, w):
        return jax.lax.conv_general_dilated(
            x, w, (1, 1), ((1, 1), (1, 1)),
            dimension_numbers=("NCHW", "OIHW", "NCHW"),
            precision=jax.lax.Precision.HIGHEST)

    def inorm(x, g, b):
        mean = x.mean(axis=(2, 3), keepdims=True)
        var = ((x - mean) ** 2).mean(axis=(2, 3), keepdims=True)
        xh = (x - mean) / jnp.sqrt(var + EPS)
        return xh * g[None, :, None, None] + b[None, :, None, None]

    h = jax.nn.relu(inorm(conv(x_nchw, w1), g1, b1))
    h = inorm(conv(h, w2), g2, b2)
    return x_nchw + h


# ----------------------------------- main ----------------------------------- #

if __name__ == "__main__":
    N, C, H, W = 2, 4, 16, 16        # in_channels == out_channels (residual add)
    K = 3

    key = jax.random.PRNGKey(0)
    kx, kw1, kw2, kg1, kb1, kg2, kb2 = jax.random.split(key, 7)

    x = jax.random.normal(kx, (N, C, H, W), dtype=jnp.float32)
    fan_in = C * K * K
    w1 = jax.random.normal(kw1, (C, C, K, K), dtype=jnp.float32) / jnp.sqrt(fan_in)
    w2 = jax.random.normal(kw2, (C, C, K, K), dtype=jnp.float32) / jnp.sqrt(fan_in)
    g1 = 1.0 + 0.1 * jax.random.normal(kg1, (C,), dtype=jnp.float32)
    b1 = 0.1 * jax.random.normal(kb1, (C,), dtype=jnp.float32)
    g2 = 1.0 + 0.1 * jax.random.normal(kg2, (C,), dtype=jnp.float32)
    b2 = 0.1 * jax.random.normal(kb2, (C,), dtype=jnp.float32)

    out = jax.jit(resblock_forward)(x, w1, g1, b1, w2, g2, b2)
    out = jax.block_until_ready(out)

    ref = jax.block_until_ready(_ref_forward(x, w1, g1, b1, w2, g2, b2))
    np.testing.assert_allclose(np.asarray(out), np.asarray(ref),
                               rtol=1e-4, atol=1e-4)

    print("KERNEL_OK")
</pallas_src>

<mosaic_0001>
module attributes {stable_mosaic.version = 11 : i64} {
  func.func @_resblock_kernel(%arg0: i32, %arg1: memref<8x256xf32, #tpu.memory_space<vmem>>, %arg2: memref<8x36xf32, #tpu.memory_space<vmem>>, %arg3: memref<8x36xf32, #tpu.memory_space<vmem>>, %arg4: memref<8x4xf32, #tpu.memory_space<vmem>>, %arg5: memref<8x256xf32, #tpu.memory_space<vmem>>, %arg6: memref<32x512xf32, #tpu.memory_space<vmem>>) attributes {dimension_semantics = [#tpu.dimension_semantics<arbitrary>], iteration_bounds = array<i64: 1>, scalar_prefetch = 0 : i64, scratch_operands = 1 : i64, tpu.core_type = #tpu.core_type<tc>, window_params = [{pipeline_mode = #tpu.pipeline_mode<synchronous>, transform_indices = @transform_0, window_bounds = array<i64: 8, 256>}, {pipeline_mode = #tpu.pipeline_mode<synchronous>, transform_indices = @transform_1, window_bounds = array<i64: 8, 36>}, {pipeline_mode = #tpu.pipeline_mode<synchronous>, transform_indices = @transform_2, window_bounds = array<i64: 8, 36>}, {pipeline_mode = #tpu.pipeline_mode<synchronous>, transform_indices = @transform_3, window_bounds = array<i64: 8, 4>}, {pipeline_mode = #tpu.pipeline_mode<synchronous>, transform_indices = @transform_4, window_bounds = array<i64: 8, 256>}]} {
    %0 = tpu.iota {dimensions = array<i32: 1>} : vector<1x256xi32>
    %c16_i32 = arith.constant 16 : i32
    %c0_i32 = arith.constant 0 : i32
    %1 = arith.cmpi eq, %c16_i32, %c0_i32 : i32
    %c1_i32 = arith.constant 1 : i32
    %2 = arith.select %1, %c1_i32, %c16_i32 : i32
    %3 = vector.broadcast %2 : i32 to vector<1x256xi32>
    %4 = arith.remsi %0, %3 : vector<1x256xi32>
    %c0_i32_0 = arith.constant 0 : i32
    %5 = vector.broadcast %c0_i32_0 : i32 to vector<1x256xi32>
    %6 = arith.cmpi ne, %4, %5 : vector<1x256xi32>
    %c0_i32_1 = arith.constant 0 : i32
    %7 = vector.broadcast %c0_i32_1 : i32 to vector<1x256xi32>
    %8 = arith.cmpi slt, %4, %7 : vector<1x256xi32>
    %c0_i32_2 = arith.constant 0 : i32
    %9 = arith.cmpi slt, %2, %c0_i32_2 : i32
    %10 = vector.broadcast %9 : i1 to vector<1x256xi1>
    %11 = vector.broadcast %10 : vector<1x256xi1> to vector<1x256xi1>
    %12 = arith.xori %8, %11 : vector<1x256xi1>
    %13 = arith.andi %12, %6 : vector<1x256xi1>
    %14 = vector.broadcast %2 : i32 to vector<1x256xi32>
    %15 = arith.addi %4, %14 : vector<1x256xi32>
    %16 = arith.select %13, %15, %4 : vector<1x256xi1>, vector<1x256xi32>
    %c1_i32_3 = arith.constant 1 : i32
    %17 = vector.broadcast %c1_i32_3 : i32 to vector<1x256xi32>
    %18 = arith.cmpi sge, %16, %17 : vector<1x256xi32>
    %19 = arith.extui %18 : vector<1x256xi1> to vector<1x256xi32>
    %20 = arith.sitofp %19 : vector<1x256xi32> to vector<1x256xf32>
    %c14_i32 = arith.constant 14 : i32
    %21 = vector.broadcast %c14_i32 : i32 to vector<1x256xi32>
    %22 = arith.cmpi sle, %16, %21 : vector<1x256xi32>
    %23 = arith.extui %22 : vector<1x256xi1> to vector<1x256xi32>
    %24 = arith.sitofp %23 : vector<1x256xi32> to vector<1x256xf32>
    %c0 = arith.constant 0 : index
    %c0_4 = arith.constant 0 : index
    %25 = vector.load %arg1[%c0, %c0_4] : memref<8x256xf32, #tpu.memory_space<vmem>>, vector<8x256xf32>
    %c0_5 = arith.constant 0 : index
    %c0_6 = arith.constant 0 : index
    %26 = vector.load %arg2[%c0_5, %c0_6] : memref<8x36xf32, #tpu.memory_space<vmem>>, vector<8x36xf32>
    %c0_7 = arith.constant 0 : index
    %c0_8 = arith.constant 0 : index
    %27 = vector.load %arg3[%c0_7, %c0_8] : memref<8x36xf32, #tpu.memory_space<vmem>>, vector<8x36xf32>
    %c0_9 = arith.constant 0 : index
    %c0_10 = arith.constant 0 : index
    %28 = vector.load %arg4[%c0_9, %c0_10] : memref<8x4xf32, #tpu.memory_space<vmem>>, vector<8x4xf32>
    %cst = arith.constant 0.000000e+00 : f32
    %29 = vector.broadcast %cst : f32 to vector<32x512xf32>
    %c0_11 = arith.constant 0 : index
    %c0_12 = arith.constant 0 : index
    %30 = vector.load %arg6[%c0_11, %c0_12] : memref<32x512xf32, #tpu.memory_space<vmem>>, vector<32x512xf32>
    tpu.vector_store %arg6[%c0_11, %c0_12], %29 {strides = array<i32>} : memref<32x512xf32, #tpu.memory_space<vmem>>, vector<32x512xf32>,
    %31 = vector.extract_strided_slice %25 {offsets = [0, 0], sizes = [1, 256], strides = [1, 1]} : vector<8x256xf32> to vector<1x256xf32>
    %32 = vector.shape_cast %31 : vector<1x256xf32> to vector<1x256xf32>
    %33 = vector.broadcast %32 : vector<1x256xf32> to vector<4x256xf32>
    %c0_13 = arith.constant 0 : index
    %c128 = arith.constant 128 : index
    %34 = vector.load %arg6[%c0_13, %c128] : memref<32x512xf32, #tpu.memory_space<vmem>>, vector<4x256xf32>
    tpu.vector_store %arg6[%c0_13, %c128], %33 {strides = array<i32>} : memref<32x512xf32, #tpu.memory_space<vmem>>, vector<4x256xf32>,
    %35 = vector.extract_strided_slice %25 {offsets = [4, 0], sizes = [1, 256], strides = [1, 1]} : vector<8x256xf32> to vector<1x256xf32>
    %36 = vector.shape_cast %35 : vector<1x256xf32> to vector<1x256xf32>
    %37 = vector.broadcast %36 : vector<1x256xf32> to vector<4x256xf32>
    %c4 = arith.constant 4 : index
    %c128_14 = arith.constant 128 : index
    %38 = vector.load %arg6[%c4, %c128_14] : memref<32x512xf32, #tpu.memory_space<vmem>>, vector<4x256xf32>
    tpu.vector_store %arg6[%c4, %c128_14], %37 {strides = array<i32>} : memref<32x512xf32, #tpu.memory_space<vmem>>, vector<4x256xf32>,
    %39 = vector.extract_strided_slice %25 {offsets = [1, 0], sizes = [1, 256], strides = [1, 1]} : vector<8x256xf32> to vector<1x256xf32>
    %40 = vector.shape_cast %39 : vector<1x256xf32> to vector<1x256xf32>
    %41 = vector.broadcast %40 : vector<1x256xf32> to vector<4x256xf32>
    %c8 = arith.constant 8 : index
    %c128_15 = arith.constant 128 : index
    %42 = vector.load %arg6[%c8, %c128_15] : memref<32x512xf32, #tpu.memory_space<vmem>>, vector<4x256xf32>
    tpu.vector_store %arg6[%c8, %c128_15], %41 {strides = array<i32>} : memref<32x512xf32, #tpu.memory_space<vmem>>, vector<4x256xf32>,
    %43 = vector.extract_strided_slice %25 {offsets = [5, 0], sizes = [1, 256], strides = [1, 1]} : vector<8x256xf32> to vector<1x256xf32>
    %44 = vector.shape_cast %43 : vector<1x256xf32> to vector<1x256xf32>
    %45 = vector.broadcast %44 : vector<1x256xf32> to vector<4x256xf32>
    %c12 = arith.constant 12 : index
    %c128_16 = arith.constant 128 : index
    %46 = vector.load %arg6[%c12, %c128_16] : memref<32x512xf32, #tpu.memory_space<vmem>>, vector<4x256xf32>
    tpu.vector_store %arg6[%c12, %c128_16], %45 {strides = array<i32>} : memref<32x512xf32, #tpu.memory_space<vmem>>, vector<4x256xf32>,
    %47 = vector.extract_strided_slice %25 {offsets = [2, 0], sizes = [1, 256], strides = [1, 1]} : vector<8x256xf32> to vector<1x256xf32>
    %48 = vector.shape_cast %47 : vector<1x256xf32> to vector<1x256xf32>
    %49 = vector.broadcast %48 : vector<1x256xf32> to vector<4x256xf32>
    %c16 = arith.constant 16 : index
    %c128_17 = arith.constant 128 : index
    %50 = vector.load %arg6[%c16, %c128_17] : memref<32x512xf32, #tpu.memory_space<vmem>>, vector<4x256xf32>
    tpu.vector_store %arg6[%c16, %c128_17], %49 {strides = array<i32>} : memref<32x512xf32, #tpu.memory_space<vmem>>, vector<4x256xf32>,
    %51 = vector.extract_strided_slice %25 {offsets = [6, 0], sizes = [1, 256], strides = [1, 1]} : vector<8x256xf32> to vector<1x256xf32>
    %52 = vector.shape_cast %51 : vector<1x256xf32> to vector<1x256xf32>
    %53 = vector.broadcast %52 : vector<1x256xf32> to vector<4x256xf32>
    %c20 = arith.constant 20 : index
    %c128_18 = arith.constant 128 : index
    %54 = vector.load %arg6[%c20, %c128_18] : memref<32x512xf32, #tpu.memory_space<vmem>>, vector<4x256xf32>
    tpu.vector_store %arg6[%c20, %c128_18], %53 {strides = array<i32>} : memref<32x512xf32, #tpu.memory_space<vmem>>, vector<4x256xf32>,
    %55 = vector.extract_strided_slice %25 {offsets = [3, 0], sizes = [1, 256], strides = [1, 1]} : vector<8x256xf32> to vector<1x256xf32>
    %56 = vector.shape_cast %55 : vector<1x256xf32> to vector<1x256xf32>
    %57 = vector.broadcast %56 : vector<1x256xf32> to vector<4x256xf32>
    %c24 = arith.constant 24 : index
    %c128_19 = arith.constant 128 : index
    %58 = vector.load %arg6[%c24, %c128_19] : memref<32x512xf32, #tpu.memory_space<vmem>>, vector<4x256xf32>
    tpu.vector_store %arg6[%c24, %c128_19], %57 {strides = array<i32>} : memref<32x512xf32, #tpu.memory_space<vmem>>, vector<4x256xf32>,
    %59 = vector.extract_strided_slice %25 {offsets = [7, 0], sizes = [1, 256], strides = [1, 1]} : vector<8x256xf32> to vector<1x256xf32>
    %60 = vector.shape_cast %59 : vector<1x256xf32> to vector<1x256xf32>
    %61 = vector.broadcast %60 : vector<1x256xf32> to vector<4x256xf32>
    %c28 = arith.constant 28 : index
    %c128_20 = arith.constant 128 : index
    %62 = vector.load %arg6[%c28, %c128_20] : memref<32x512xf32, #tpu.memory_space<vmem>>, vector<4x256xf32>
    tpu.vector_store %arg6[%c28, %c128_20], %61 {strides = array<i32>} : memref<32x512xf32, #tpu.memory_space<vmem>>, vector<4x256xf32>,
    %cst_21 = arith.constant 0.000000e+00 : f32
    %63 = vector.broadcast %cst_21 : f32 to vector<8x256xf32>
    %cst_22 = arith.constant 0.000000e+00 : f32
    %64 = vector.broadcast %cst_22 : f32 to vector<8x256xf32>
    %cst_23 = arith.constant 0.000000e+00 : f32
    %65 = vector.broadcast %cst_23 : f32 to vector<8x256xf32>
    %c0_24 = arith.constant 0 : index
    %c111 = arith.constant 111 : index
    %66 = vector.load %arg6[%c0_24, %c111] : memref<32x512xf32, #tpu.memory_space<vmem>>, vector<8x256xf32>
    %67 = vector.extract_strided_slice %26 {offsets = [0, 0], sizes = [8, 1], strides = [1, 1]} : vector<8x36xf32> to vector<8x1xf32>
    %68 = vector.broadcast %67 : vector<8x1xf32> to vector<8x256xf32>
    %69 = arith.mulf %68, %66 : vector<8x256xf32>
    %70 = arith.addf %63, %69 : vector<8x256xf32>
    %c8_25 = arith.constant 8 : index
    %c111_26 = arith.constant 111 : index
    %71 = vector.load %arg6[%c8_25, %c111_26] : memref<32x512xf32, #tpu.memory_space<vmem>>, vector<8x256xf32>
    %72 = vector.extract_strided_slice %26 {offsets = [0, 1], sizes = [8, 1], strides = [1, 1]} : vector<8x36xf32> to vector<8x1xf32>
    %73 = vector.broadcast %72 : vector<8x1xf32> to vector<8x256xf32>
    %74 = arith.mulf %73, %71 : vector<8x256xf32>
    %75 = arith.addf %70, %74 : vector<8x256xf32>
    %c16_27 = arith.constant 16 : index
    %c111_28 = arith.constant 111 : index
    %76 = vector.load %arg6[%c16_27, %c111_28] : memref<32x512xf32, #tpu.memory_space<vmem>>, vector<8x256xf32>
    %77 = vector.extract_strided_slice %26 {offsets = [0, 2], sizes = [8, 1], strides = [1, 1]} : vector<8x36xf32> to vector<8x1xf32>
    %78 = vector.broadcast %77 : vector<8x1xf32> to vector<8x256xf32>
    %79 = arith.mulf %78, %76 : vector<8x256xf32>
    %80 = arith.addf %75, %79 : vector<8x256xf32>
    %c24_29 = arith.constant 24 : index
    %c111_30 = arith.constant 111 : index
    %81 = vector.load %arg6[%c24_29, %c111_30] : memref<32x512xf32, #tpu.memory_space<vmem>>, vector<8x256xf32>
    %82 = vector.extract_strided_slice %26 {offsets = [0, 3], sizes = [8, 1], strides = [1, 1]} : vector<8x36xf32> to vector<8x1xf32>
    %83 = vector.broadcast %82 : vector<8x1xf32> to vector<8x256xf32>
    %84 = arith.mulf %83, %81 : vector<8x256xf32>
    %85 = arith.addf %80, %84 : vector<8x256xf32>
    %c0_31 = arith.constant 0 : index
    %c112 = arith.constant 112 : index
    %86 = vector.load %arg6[%c0_31, %c112] : memref<32x512xf32, #tpu.memory_space<vmem>>, vector<8x256xf32>
    %87 = vector.extract_strided_slice %26 {offsets = [0, 4], sizes = [8, 1], strides = [1, 1]} : vector<8x36xf32> to vector<8x1xf32>
    %88 = vector.broadcast %87 : vector<8x1xf32> to vector<8x256xf32>
    %89 = arith.mulf %88, %86 : vector<8x256xf32>
    %90 = arith.addf %64, %89 : vector<8x256xf32>
    %c8_32 = arith.constant 8 : index
    %c112_33 = arith.constant 112 : index
    %91 = vector.load %arg6[%c8_32, %c112_33] : memref<32x512xf32, #tpu.memory_space<vmem>>, vector<8x256xf32>
    %92 = vector.extract_strided_slice %26 {offsets = [0, 5], sizes = [8, 1], strides = [1, 1]} : vector<8x36xf32> to vector<8x1xf32>
    %93 = vector.broadcast %92 : vector<8x1xf32> to vector<8x256xf32>
    %94 = arith.mulf %93, %91 : vector<8x256xf32>
    %95 = arith.addf %90, %94 : vector<8x256xf32>
    %c16_34 = arith.constant 16 : index
    %c112_35 = arith.constant 112 : index
    %96 = vector.load %arg6[%c16_34, %c112_35] : memref<32x512xf32, #tpu.memory_space<vmem>>, vector<8x256xf32>
    %97 = vector.extract_strided_slice %26 {offsets = [0, 6], sizes = [8, 1], strides = [1, 1]} : vector<8x36xf32> to vector<8x1xf32>
    %98 = vector.broadcast %97 : vector<8x1xf32> to vector<8x256xf32>
    %99 = arith.mulf %98, %96 : vector<8x256xf32>
    %100 = arith.addf %95, %99 : vector<8x256xf32>
    %c24_36 = arith.constant 24 : index
    %c112_37 = arith.constant 112 : index
    %101 = vector.load %arg6[%c24_36, %c112_37] : memref<32x512xf32, #tpu.memory_space<vmem>>, vector<8x256xf32>
    %102 = vector.extract_strided_slice %26 {offsets = [0, 7], sizes = [8, 1], strides = [1, 1]} : vector<8x36xf32> to vector<8x1xf32>
    %103 = vector.broadcast %102 : vector<8x1xf32> to vector<8x256xf32>
    %104 = arith.mulf %103, %101 : vector<8x256xf32>
    %105 = arith.addf %100, %104 : vector<8x256xf32>
    %c0_38 = arith.constant 0 : index
    %c113 = arith.constant 113 : index
    %106 = vector.load %arg6[%c0_38, %c113] : memref<32x512xf32, #tpu.memory_space<vmem>>, vector<8x256xf32>
    %107 = vector.extract_strided_slice %26 {offsets = [0, 8], sizes = [8, 1], strides = [1, 1]} : vector<8x36xf32> to vector<8x1xf32>
    %108 = vector.broadcast %107 : vector<8x1xf32> to vector<8x256xf32>
    %109 = arith.mulf %108, %106 : vector<8x256xf32>
    %110 = arith.addf %65, %109 : vector<8x256xf32>
    %c8_39 = arith.constant 8 : index
    %c113_40 = arith.constant 113 : index
    %111 = vector.load %arg6[%c8_39, %c113_40] : memref<32x512xf32, #tpu.memory_space<vmem>>, vector<8x256xf32>
    %112 = vector.extract_strided_slice %26 {offsets = [0, 9], sizes = [8, 1], strides = [1, 1]} : vector<8x36xf32> to vector<8x1xf32>
    %113 = vector.broadcast %112 : vector<8x1xf32> to vector<8x256xf32>
    %114 = arith.mulf %113, %111 : vector<8x256xf32>
    %115 = arith.addf %110, %114 : vector<8x256xf32>
    %c16_41 = arith.constant 16 : index
    %c113_42 = arith.constant 113 : index
    %116 = vector.load %arg6[%c16_41, %c113_42] : memref<32x512xf32, #tpu.memory_space<vmem>>, vector<8x256xf32>
    %117 = vector.extract_strided_slice %26 {offsets = [0, 10], sizes = [8, 1], strides = [1, 1]} : vector<8x36xf32> to vector<8x1xf32>
    %118 = vector.broadcast %117 : vector<8x1xf32> to vector<8x256xf32>
    %119 = arith.mulf %118, %116 : vector<8x256xf32>
    %120 = arith.addf %115, %119 : vector<8x256xf32>
    %c24_43 = arith.constant 24 : index
    %c113_44 = arith.constant 113 : index
    %121 = vector.load %arg6[%c24_43, %c113_44] : memref<32x512xf32, #tpu.memory_space<vmem>>, vector<8x256xf32>
    %122 = vector.extract_strided_slice %26 {offsets = [0, 11], sizes = [8, 1], strides = [1, 1]} : vector<8x36xf32> to vector<8x1xf32>
    %123 = vector.broadcast %122 : vector<8x1xf32> to vector<8x256xf32>
    %124 = arith.mulf %123, %121 : vector<8x256xf32>
    %125 = arith.addf %120, %124 : vector<8x256xf32>
    %c0_45 = arith.constant 0 : index
    %c127 = arith.constant 127 : index
    %126 = vector.load %arg6[%c0_45, %c127] : memref<32x512xf32, #tpu.memory_space<vmem>>, vector<8x256xf32>
    %127 = vector.extract_strided_slice %26 {offsets = [0, 12], sizes = [8, 1], strides = [1, 1]} : vector<8x36xf32> to vector<8x1xf32>
    %128 = vector.broadcast %127 : vector<8x1xf32> to vector<8x256xf32>
    %129 = arith.mulf %128, %126 : vector<8x256xf32>
    %130 = arith.addf %85, %129 : vector<8x256xf32>
    %c8_46 = arith.constant 8 : index
    %c127_47 = arith.constant 127 : index
    %131 = vector.load %arg6[%c8_46, %c127_47] : memref<32x512xf32, #tpu.memory_space<vmem>>, vector<8x256xf32>
    %132 = vector.extract_strided_slice %26 {offsets = [0, 13], sizes = [8, 1], strides = [1, 1]} : vector<8x36xf32> to vector<8x1xf32>
    %133 = vector.broadcast %132 : vector<8x1xf32> to vector<8x256xf32>
    %134 = arith.mulf %133, %131 : vector<8x256xf32>
    %135 = arith.addf %130, %134 : vector<8x256xf32>
    %c16_48 = arith.constant 16 : index
    %c127_49 = arith.constant 127 : index
    %136 = vector.load %arg6[%c16_48, %c127_49] : memref<32x512xf32, #tpu.memory_space<vmem>>, vector<8x256xf32>
    %137 = vector.extract_strided_slice %26 {offsets = [0, 14], sizes = [8, 1], strides = [1, 1]} : vector<8x36xf32> to vector<8x1xf32>
    %138 = vector.broadcast %137 : vector<8x1xf32> to vector<8x256xf32>
    %139 = arith.mulf %138, %136 : vector<8x256xf32>
    %140 = arith.addf %135, %139 : vector<8x256xf32>
    %c24_50 = arith.constant 24 : index
    %c127_51 = arith.constant 127 : index
    %141 = vector.load %arg6[%c24_50, %c127_51] : memref<32x512xf32, #tpu.memory_space<vmem>>, vector<8x256xf32>
    %142 = vector.extract_strided_slice %26 {offsets = [0, 15], sizes = [8, 1], strides = [1, 1]} : vector<8x36xf32> to vector<8x1xf32>
    %143 = vector.broadcast %142 : vector<8x1xf32> to vector<8x256xf32>
    %144 = arith.mulf %143, %141 : vector<8x256xf32>
    %145 = arith.addf %140, %144 : vector<8x256xf32>
    %c0_52 = arith.constant 0 : index
    %c128_53 = arith.constant 128 : index
    %146 = vector.load %arg6[%c0_52, %c128_53] : memref<32x512xf32, #tpu.memory_space<vmem>>, vector<8x256xf32>
    %147 = vector.extract_strided_slice %26 {offsets = [0, 16], sizes = [8, 1], strides = [1, 1]} : vector<8x36xf32> to vector<8x1xf32>
    %148 = vector.broadcast %147 : vector<8x1xf32> to vector<8x256xf32>
    %149 = arith.mulf %148, %146 : vector<8x256xf32>
    %150 = arith.addf %105, %149 : vector<8x256xf32>
    %c8_54 = arith.constant 8 : index
    %c128_55 = arith.constant 128 : index
    %151 = vector.load %arg6[%c8_54, %c128_55] : memref<32x512xf32, #tpu.memory_space<vmem>>, vector<8x256xf32>
    %152 = vector.extract_strided_slice %26 {offsets = [0, 17], sizes = [8, 1], strides = [1, 1]} : vector<8x36xf32> to vector<8x1xf32>
    %153 = vector.broadcast %152 : vector<8x1xf32> to vector<8x256xf32>
    %154 = arith.mulf %153, %151 : vector<8x256xf32>
    %155 = arith.addf %150, %154 : vector<8x256xf32>
    %c16_56 = arith.constant 16 : index
    %c128_57 = arith.constant 128 : index
    %156 = vector.load %arg6[%c16_56, %c128_57] : memref<32x512xf32, #tpu.memory_space<vmem>>, vector<8x256xf32>
    %157 = vector.extract_strided_slice %26 {offsets = [0, 18], sizes = [8, 1], strides = [1, 1]} : vector<8x36xf32> to vector<8x1xf32>
    %158 = vector.broadcast %157 : vector<8x1xf32> to vector<8x256xf32>
    %159 = arith.mulf %158, %156 : vector<8x256xf32>
    %160 = arith.addf %155, %159 : vector<8x256xf32>
    %c24_58 = arith.constant 24 : index
    %c128_59 = arith.constant 128 : index
    %161 = vector.load %arg6[%c24_58, %c128_59] : memref<32x512xf32, #tpu.memory_space<vmem>>, vector<8x256xf32>
    %162 = vector.extract_strided_slice %26 {offsets = [0, 19], sizes = [8, 1], strides = [1, 1]} : vector<8x36xf32> to vector<8x1xf32>
    %163 = vector.broadcast %162 : vector<8x1xf32> to vector<8x256xf32>
    %164 = arith.mulf %163, %161 : vector<8x256xf32>
    %165 = arith.addf %160, %164 : vector<8x256xf32>
    %c0_60 = arith.constant 0 : index
    %c129 = arith.constant 129 : index
    %166 = vector.load %arg6[%c0_60, %c129] : memref<32x512xf32, #tpu.memory_space<vmem>>, vector<8x256xf32>
    %167 = vector.extract_strided_slice %26 {offsets = [0, 20], sizes = [8, 1], strides = [1, 1]} : vector<8x36xf32> to vector<8x1xf32>
    %168 = vector.broadcast %167 : vector<8x1xf32> to vector<8x256xf32>
    %169 = arith.mulf %168, %166 : vector<8x256xf32>
    %170 = arith.addf %125, %169 : vector<8x256xf32>
    %c8_61 = arith.constant 8 : index
    %c129_62 = arith.constant 129 : index
    %171 = vector.load %arg6[%c8_61, %c129_62] : memref<32x512xf32, #tpu.memory_space<vmem>>, vector<8x256xf32>
    %172 = vector.extract_strided_slice %26 {offsets = [0, 21], sizes = [8, 1], strides = [1, 1]} : vector<8x36xf32> to vector<8x1xf32>
    %173 = vector.broadcast %172 : vector<8x1xf32> to vector<8x256xf32>
    %174 = arith.mulf %173, %171 : vector<8x256xf32>
    %175 = arith.addf %170, %174 : vector<8x256xf32>
    %c16_63 = arith.constant 16 : index
    %c129_64 = arith.constant 129 : index
    %176 = vector.load %arg6[%c16_63, %c129_64] : memref<32x512xf32, #tpu.memory_space<vmem>>, vector<8x256xf32>
    %177 = vector.extract_strided_slice %26 {offsets = [0, 22], sizes = [8, 1], strides = [1, 1]} : vector<8x36xf32> to vector<8x1xf32>
    %178 = vector.broadcast %177 : vector<8x1xf32> to vector<8x256xf32>
    %179 = arith.mulf %178, %176 : vector<8x256xf32>
    %180 = arith.addf %175, %179 : vector<8x256xf32>
    %c24_65 = arith.constant 24 : index
    %c129_66 = arith.constant 129 : index
    %181 = vector.load %arg6[%c24_65, %c129_66] : memref<32x512xf32, #tpu.memory_space<vmem>>, vector<8x256xf32>
    %182 = vector.extract_strided_slice %26 {offsets = [0, 23], sizes = [8, 1], strides = [1, 1]} : vector<8x36xf32> to vector<8x1xf32>
    %183 = vector.broadcast %182 : vector<8x1xf32> to vector<8x256xf32>
    %184 = arith.mulf %183, %181 : vector<8x256xf32>
    %185 = arith.addf %180, %184 : vector<8x256xf32>
    %c0_67 = arith.constant 0 : index
    %c143 = arith.constant 143 : index
    %186 = vector.load %arg6[%c0_67, %c143] : memref<32x512xf32, #tpu.memory_space<vmem>>, vector<8x256xf32>
    %187 = vector.extract_strided_slice %26 {offsets = [0, 24], sizes = [8, 1], strides = [1, 1]} : vector<8x36xf32> to vector<8x1xf32>
    %188 = vector.broadcast %187 : vector<8x1xf32> to vector<8x256xf32>
    %189 = arith.mulf %188, %186 : vector<8x256xf32>
    %190 = arith.addf %145, %189 : vector<8x256xf32>
    %c8_68 = arith.constant 8 : index
    %c143_69 = arith.constant 143 : index
    %191 = vector.load %arg6[%c8_68, %c143_69] : memref<32x512xf32, #tpu.memory_space<vmem>>, vector<8x256xf32>
    %192 = vector.extract_strided_slice %26 {offsets = [0, 25], sizes = [8, 1], strides = [1, 1]} : vector<8x36xf32> to vector<8x1xf32>
    %193 = vector.broadcast %192 : vector<8x1xf32> to vector<8x256xf32>
    %194 = arith.mulf %193, %191 : vector<8x256xf32>
    %195 = arith.addf %190, %194 : vector<8x256xf32>
    %c16_70 = arith.constant 16 : index
    %c143_71 = arith.constant 143 : index
    %196 = vector.load %arg6[%c16_70, %c143_71] : memref<32x512xf32, #tpu.memory_space<vmem>>, vector<8x256xf32>
    %197 = vector.extract_strided_slice %26 {offsets = [0, 26], sizes = [8, 1], strides = [1, 1]} : vector<8x36xf32> to vector<8x1xf32>
    %198 = vector.broadcast %197 : vector<8x1xf32> to vector<8x256xf32>
    %199 = arith.mulf %198, %196 : vector<8x256xf32>
    %200 = arith.addf %195, %199 : vector<8x256xf32>
    %c24_72 = arith.constant 24 : index
    %c143_73 = arith.constant 143 : index
    %201 = vector.load %arg6[%c24_72, %c143_73] : memref<32x512xf32, #tpu.memory_space<vmem>>, vector<8x256xf32>
    %202 = vector.extract_strided_slice %26 {offsets = [0, 27], sizes = [8, 1], strides = [1, 1]} : vector<8x36xf32> to vector<8x1xf32>
    %203 = vector.broadcast %202 : vector<8x1xf32> to vector<8x256xf32>
    %204 = arith.mulf %203, %201 : vector<8x256xf32>
    %205 = arith.addf %200, %204 : vector<8x256xf32>
    %c0_74 = arith.constant 0 : index
    %c144 = arith.constant 144 : index
    %206 = vector.load %arg6[%c0_74, %c144] : memref<32x512xf32, #tpu.memory_space<vmem>>, vector<8x256xf32>
    %207 = vector.extract_strided_slice %26 {offsets = [0, 28], sizes = [8, 1], strides = [1, 1]} : vector<8x36xf32> to vector<8x1xf32>
    %208 = vector.broadcast %207 : vector<8x1xf32> to vector<8x256xf32>
    %209 = arith.mulf %208, %206 : vector<8x256xf32>
    %210 = arith.addf %165, %209 : vector<8x256xf32>
    %c8_75 = arith.constant 8 : index
    %c144_76 = arith.constant 144 : index
    %211 = vector.load %arg6[%c8_75, %c144_76] : memref<32x512xf32, #tpu.memory_space<vmem>>, vector<8x256xf32>
    %212 = vector.extract_strided_slice %26 {offsets = [0, 29], sizes = [8, 1], strides = [1, 1]} : vector<8x36xf32> to vector<8x1xf32>
    %213 = vector.broadcast %212 : vector<8x1xf32> to vector<8x256xf32>
    %214 = arith.mulf %213, %211 : vector<8x256xf32>
    %215 = arith.addf %210, %214 : vector<8x256xf32>
    %c16_77 = arith.constant 16 : index
    %c144_78 = arith.constant 144 : index
    %216 = vector.load %arg6[%c16_77, %c144_78] : memref<32x512xf32, #tpu.memory_space<vmem>>, vector<8x256xf32>
    %217 = vector.extract_strided_slice %26 {offsets = [0, 30], sizes = [8, 1], strides = [1, 1]} : vector<8x36xf32> to vector<8x1xf32>
    %218 = vector.broadcast %217 : vector<8x1xf32> to vector<8x256xf32>
    %219 = arith.mulf %218, %216 : vector<8x256xf32>
    %220 = arith.addf %215, %219 : vector<8x256xf32>
    %c24_79 = arith.constant 24 : index
    %c144_80 = arith.constant 144 : index
    %221 = vector.load %arg6[%c24_79, %c144_80] : memref<32x512xf32, #tpu.memory_space<vmem>>, vector<8x256xf32>
    %222 = vector.extract_strided_slice %26 {offsets = [0, 31], sizes = [8, 1], strides = [1, 1]} : vector<8x36xf32> to vector<8x1xf32>
    %223 = vector.broadcast %222 : vector<8x1xf32> to vector<8x256xf32>
    %224 = arith.mulf %223, %221 : vector<8x256xf32>
    %225 = arith.addf %220, %224 : vector<8x256xf32>
    %c0_81 = arith.constant 0 : index
    %c145 = arith.constant 145 : index
    %226 = vector.load %arg6[%c0_81, %c145] : memref<32x512xf32, #tpu.memory_space<vmem>>, vector<8x256xf32>
    %227 = vector.extract_strided_slice %26 {offsets = [0, 32], sizes = [8, 1], strides = [1, 1]} : vector<8x36xf32> to vector<8x1xf32>
    %228 = vector.broadcast %227 : vector<8x1xf32> to vector<8x256xf32>
    %229 = arith.mulf %228, %226 : vector<8x256xf32>
    %230 = arith.addf %185, %229 : vector<8x256xf32>
    %c8_82 = arith.constant 8 : index
    %c145_83 = arith.constant 145 : index
    %231 = vector.load %arg6[%c8_82, %c145_83] : memref<32x512xf32, #tpu.memory_space<vmem>>, vector<8x256xf32>
    %232 = vector.extract_strided_slice %26 {offsets = [0, 33], sizes = [8, 1], strides = [1, 1]} : vector<8x36xf32> to vector<8x1xf32>
    %233 = vector.broadcast %232 : vector<8x1xf32> to vector<8x256xf32>
    %234 = arith.mulf %233, %231 : vector<8x256xf32>
    %235 = arith.addf %230, %234 : vector<8x256xf32>
    %c16_84 = arith.constant 16 : index
    %c145_85 = arith.constant 145 : index
    %236 = vector.load %arg6[%c16_84, %c145_85] : memref<32x512xf32, #tpu.memory_space<vmem>>, vector<8x256xf32>
    %237 = vector.extract_strided_slice %26 {offsets = [0, 34], sizes = [8, 1], strides = [1, 1]} : vector<8x36xf32> to vector<8x1xf32>
    %238 = vector.broadcast %237 : vector<8x1xf32> to vector<8x256xf32>
    %239 = arith.mulf %238, %236 : vector<8x256xf32>
    %240 = arith.addf %235, %239 : vector<8x256xf32>
    %c24_86 = arith.constant 24 : index
    %c145_87 = arith.constant 145 : index
    %241 = vector.load %arg6[%c24_86, %c145_87] : memref<32x512xf32, #tpu.memory_space<vmem>>, vector<8x256xf32>
    %242 = vector.extract_strided_slice %26 {offsets = [0, 35], sizes = [8, 1], strides = [1, 1]} : vector<8x36xf32> to vector<8x1xf32>
    %243 = vector.broadcast %242 : vector<8x1xf32> to vector<8x256xf32>
    %244 = arith.mulf %243, %241 : vector<8x256xf32>
    %245 = arith.addf %240, %244 : vector<8x256xf32>
    %246 = vector.broadcast %20 : vector<1x256xf32> to vector<8x256xf32>
    %247 = arith.mulf %205, %246 : vector<8x256xf32>
    %248 = arith.addf %225, %247 : vector<8x256xf32>
    %249 = vector.broadcast %24 : vector<1x256xf32> to vector<8x256xf32>
    %250 = arith.mulf %245, %249 : vector<8x256xf32>
    %251 = arith.addf %248, %250 : vector<8x256xf32>
    %252 = vector.extract_strided_slice %28 {offsets = [0, 0], sizes = [8, 1], strides = [1, 1]} : vector<8x4xf32> to vector<8x1xf32>
    %253 = vector.extract_strided_slice %28 {offsets = [0, 1], sizes = [8, 1], strides = [1, 1]} : vector<8x4xf32> to vector<8x1xf32>
    %cst_88 = arith.constant dense<0.000000e+00> : vector<8xf32>
    %254 = vector.multi_reduction <add>, %251, %cst_88 [1] : vector<8x256xf32> to vector<8xf32>
    %255 = vector.shape_cast %254 : vector<8xf32> to vector<8x1xf32>
    %256 = arith.mulf %251, %251 : vector<8x256xf32>
    %cst_89 = arith.constant dense<0.000000e+00> : vector<8xf32>
    %257 = vector.multi_reduction <add>, %256, %cst_89 [1] : vector<8x256xf32> to vector<8xf32>
    %258 = vector.shape_cast %257 : vector<8xf32> to vector<8x1xf32>
    %cst_90 = arith.constant 3.906250e-03 : f32
    %259 = vector.broadcast %cst_90 : f32 to vector<8x1xf32>
    %260 = arith.mulf %255, %259 : vector<8x1xf32>
    %cst_91 = arith.constant 3.906250e-03 : f32
    %261 = vector.broadcast %cst_91 : f32 to vector<8x1xf32>
    %262 = arith.mulf %258, %261 : vector<8x1xf32>
    %263 = arith.mulf %260, %260 : vector<8x1xf32>
    %264 = arith.subf %262, %263 : vector<8x1xf32>
    %cst_92 = arith.constant 9.99999974E-6 : f32
    %265 = vector.broadcast %cst_92 : f32 to vector<8x1xf32>
    %266 = arith.addf %264, %265 : vector<8x1xf32>
    %267 = math.rsqrt %266 : vector<8x1xf32>
    %268 = arith.mulf %252, %267 : vector<8x1xf32>
    %269 = vector.broadcast %268 : vector<8x1xf32> to vector<8x256xf32>
    %270 = arith.mulf %251, %269 : vector<8x256xf32>
    %271 = arith.mulf %260, %268 : vector<8x1xf32>
    %272 = arith.subf %253, %271 : vector<8x1xf32>
    %273 = vector.broadcast %272 : vector<8x1xf32> to vector<8x256xf32>
    %274 = arith.addf %270, %273 : vector<8x256xf32>
    %cst_93 = arith.constant 0.000000e+00 : f32
    %275 = vector.broadcast %cst_93 : f32 to vector<8x256xf32>
    %276 = arith.maximumf %274, %275 : vector<8x256xf32>
    %277 = vector.extract_strided_slice %276 {offsets = [0, 0], sizes = [1, 256], strides = [1, 1]} : vector<8x256xf32> to vector<1x256xf32>
    %278 = vector.shape_cast %277 : vector<1x256xf32> to vector<1x256xf32>
    %279 = vector.broadcast %278 : vector<1x256xf32> to vector<4x256xf32>
    %c0_94 = arith.constant 0 : index
    %c128_95 = arith.constant 128 : index
    %280 = vector.load %arg6[%c0_94, %c128_95] : memref<32x512xf32, #tpu.memory_space<vmem>>, vector<4x256xf32>
    tpu.vector_store %arg6[%c0_94, %c128_95], %279 {strides = array<i32>} : memref<32x512xf32, #tpu.memory_space<vmem>>, vector<4x256xf32>,
    %281 = vector.extract_strided_slice %276 {offsets = [4, 0], sizes = [1, 256], strides = [1, 1]} : vector<8x256xf32> to vector<1x256xf32>
    %282 = vector.shape_cast %281 : vector<1x256xf32> to vector<1x256xf32>
    %283 = vector.broadcast %282 : vector<1x256xf32> to vector<4x256xf32>
    %c4_96 = arith.constant 4 : index
    %c128_97 = arith.constant 128 : index
    %284 = vector.load %arg6[%c4_96, %c128_97] : memref<32x512xf32, #tpu.memory_space<vmem>>, vector<4x256xf32>
    tpu.vector_store %arg6[%c4_96, %c128_97], %283 {strides = array<i32>} : memref<32x512xf32, #tpu.memory_space<vmem>>, vector<4x256xf32>,
    %285 = vector.extract_strided_slice %276 {offsets = [1, 0], sizes = [1, 256], strides = [1, 1]} : vector<8x256xf32> to vector<1x256xf32>
    %286 = vector.shape_cast %285 : vector<1x256xf32> to vector<1x256xf32>
    %287 = vector.broadcast %286 : vector<1x256xf32> to vector<4x256xf32>
    %c8_98 = arith.constant 8 : index
    %c128_99 = arith.constant 128 : index
    %288 = vector.load %arg6[%c8_98, %c128_99] : memref<32x512xf32, #tpu.memory_space<vmem>>, vector<4x256xf32>
    tpu.vector_store %arg6[%c8_98, %c128_99], %287 {strides = array<i32>} : memref<32x512xf32, #tpu.memory_space<vmem>>, vector<4x256xf32>,
    %289 = vector.extract_strided_slice %276 {offsets = [5, 0], sizes = [1, 256], strides = [1, 1]} : vector<8x256xf32> to vector<1x256xf32>
    %290 = vector.shape_cast %289 : vector<1x256xf32> to vector<1x256xf32>
    %291 = vector.broadcast %290 : vector<1x256xf32> to vector<4x256xf32>
    %c12_100 = arith.constant 12 : index
    %c128_101 = arith.constant 128 : index
    %292 = vector.load %arg6[%c12_100, %c128_101] : memref<32x512xf32, #tpu.memory_space<vmem>>, vector<4x256xf32>
    tpu.vector_store %arg6[%c12_100, %c128_101], %291 {strides = array<i32>} : memref<32x512xf32, #tpu.memory_space<vmem>>, vector<4x256xf32>,
    %293 = vector.extract_strided_slice %276 {offsets = [2, 0], sizes = [1, 256], strides = [1, 1]} : vector<8x256xf32> to vector<1x256xf32>
    %294 = vector.shape_cast %293 : vector<1x256xf32> to vector<1x256xf32>
    %295 = vector.broadcast %294 : vector<1x256xf32> to vector<4x256xf32>
    %c16_102 = arith.constant 16 : index
    %c128_103 = arith.constant 128 : index
    %296 = vector.load %arg6[%c16_102, %c128_103] : memref<32x512xf32, #tpu.memory_space<vmem>>, vector<4x256xf32>
    tpu.vector_store %arg6[%c16_102, %c128_103], %295 {strides = array<i32>} : memref<32x512xf32, #tpu.memory_space<vmem>>, vector<4x256xf32>,
    %297 = vector.extract_strided_slice %276 {offsets = [6, 0], sizes = [1, 256], strides = [1, 1]} : vector<8x256xf32> to vector<1x256xf32>
    %298 = vector.shape_cast %297 : vector<1x256xf32> to vector<1x256xf32>
    %299 = vector.broadcast %298 : vector<1x256xf32> to vector<4x256xf32>
    %c20_104 = arith.constant 20 : index
    %c128_105 = arith.constant 128 : index
    %300 = vector.load %arg6[%c20_104, %c128_105] : memref<32x512xf32, #tpu.memory_space<vmem>>, vector<4x256xf32>
    tpu.vector_store %arg6[%c20_104, %c128_105], %299 {strides = array<i32>} : memref<32x512xf32, #tpu.memory_space<vmem>>, vector<4x256xf32>,
    %301 = vector.extract_strided_slice %276 {offsets = [3, 0], sizes = [1, 256], strides = [1, 1]} : vector<8x256xf32> to vector<1x256xf32>
    %302 = vector.shape_cast %301 : vector<1x256xf32> to vector<1x256xf32>
    %303 = vector.broadcast %302 : vector<1x256xf32> to vector<4x256xf32>
    %c24_106 = arith.constant 24 : index
    %c128_107 = arith.constant 128 : index
    %304 = vector.load %arg6[%c24_106, %c128_107] : memref<32x512xf32, #tpu.memory_space<vmem>>, vector<4x256xf32>
    tpu.vector_store %arg6[%c24_106, %c128_107], %303 {strides = array<i32>} : memref<32x512xf32, #tpu.memory_space<vmem>>, vector<4x256xf32>,
    %305 = vector.extract_strided_slice %276 {offsets = [7, 0], sizes = [1, 256], strides = [1, 1]} : vector<8x256xf32> to vector<1x256xf32>
    %306 = vector.shape_cast %305 : vector<1x256xf32> to vector<1x256xf32>
    %307 = vector.broadcast %306 : vector<1x256xf32> to vector<4x256xf32>
    %c28_108 = arith.constant 28 : index
    %c128_109 = arith.constant 128 : index
    %308 = vector.load %arg6[%c28_108, %c128_109] : memref<32x512xf32, #tpu.memory_space<vmem>>, vector<4x256xf32>
    tpu.vector_store %arg6[%c28_108, %c128_109], %307 {strides = array<i32>} : memref<32x512xf32, #tpu.memory_space<vmem>>, vector<4x256xf32>,
    %cst_110 = arith.constant 0.000000e+00 : f32
    %309 = vector.broadcast %cst_110 : f32 to vector<8x256xf32>
    %cst_111 = arith.constant 0.000000e+00 : f32
    %310 = vector.broadcast %cst_111 : f32 to vector<8x256xf32>
    %cst_112 = arith.constant 0.000000e+00 : f32
    %311 = vector.broadcast %cst_112 : f32 to vector<8x256xf32>
    %c0_113 = arith.constant 0 : index
    %c111_114 = arith.constant 111 : index
    %312 = vector.load %arg6[%c0_113, %c111_114] : memref<32x512xf32, #tpu.memory_space<vmem>>, vector<8x256xf32>
    %313 = vector.extract_strided_slice %27 {offsets = [0, 0], sizes = [8, 1], strides = [1, 1]} : vector<8x36xf32> to vector<8x1xf32>
    %314 = vector.broadcast %313 : vector<8x1xf32> to vector<8x256xf32>
    %315 = arith.mulf %314, %312 : vector<8x256xf32>
    %316 = arith.addf %309, %315 : vector<8x256xf32>
    %c8_115 = arith.constant 8 : index
    %c111_116 = arith.constant 111 : index
    %317 = vector.load %arg6[%c8_115, %c111_116] : memref<32x512xf32, #tpu.memory_space<vmem>>, vector<8x256xf32>
    %318 = vector.extract_strided_slice %27 {offsets = [0, 1], sizes = [8, 1], strides = [1, 1]} : vector<8x36xf32> to vector<8x1xf32>
    %319 = vector.broadcast %318 : vector<8x1xf32> to vector<8x256xf32>
    %320 = arith.mulf %319, %317 : vector<8x256xf32>
    %321 = arith.addf %316, %320 : vector<8x256xf32>
    %c16_117 = arith.constant 16 : index
    %c111_118 = arith.constant 111 : index
    %322 = vector.load %arg6[%c16_117, %c111_118] : memref<32x512xf32, #tpu.memory_space<vmem>>, vector<8x256xf32>
    %323 = vector.extract_strided_slice %27 {offsets = [0, 2], sizes = [8, 1], strides = [1, 1]} : vector<8x36xf32> to vector<8x1xf32>
    %324 = vector.broadcast %323 : vector<8x1xf32> to vector<8x256xf32>
    %325 = arith.mulf %324, %322 : vector<8x256xf32>
    %326 = arith.addf %321, %325 : vector<8x256xf32>
    %c24_119 = arith.constant 24 : index
    %c111_120 = arith.constant 111 : index
    %327 = vector.load %arg6[%c24_119, %c111_120] : memref<32x512xf32, #tpu.memory_space<vmem>>, vector<8x256xf32>
    %328 = vector.extract_strided_slice %27 {offsets = [0, 3], sizes = [8, 1], strides = [1, 1]} : vector<8x36xf32> to vector<8x1xf32>
    %329 = vector.broadcast %328 : vector<8x1xf32> to vector<8x256xf32>
    %330 = arith.mulf %329, %327 : vector<8x256xf32>
    %331 = arith.addf %326, %330 : vector<8x256xf32>
    %c0_121 = arith.constant 0 : index
    %c112_122 = arith.constant 112 : index
    %332 = vector.load %arg6[%c0_121, %c112_122] : memref<32x512xf32, #tpu.memory_space<vmem>>, vector<8x256xf32>
    %333 = vector.extract_strided_slice %27 {offsets = [0, 4], sizes = [8, 1], strides = [1, 1]} : vector<8x36xf32> to vector<8x1xf32>
    %334 = vector.broadcast %333 : vector<8x1xf32> to vector<8x256xf32>
    %335 = arith.mulf %334, %332 : vector<8x256xf32>
    %336 = arith.addf %310, %335 : vector<8x256xf32>
    %c8_123 = arith.constant 8 : index
    %c112_124 = arith.constant 112 : index
    %337 = vector.load %arg6[%c8_123, %c112_124] : memref<32x512xf32, #tpu.memory_space<vmem>>, vector<8x256xf32>
    %338 = vector.extract_strided_slice %27 {offsets = [0, 5], sizes = [8, 1], strides = [1, 1]} : vector<8x36xf32> to vector<8x1xf32>
    %339 = vector.broadcast %338 : vector<8x1xf32> to vector<8x256xf32>
    %340 = arith.mulf %339, %337 : vector<8x256xf32>
    %341 = arith.addf %336, %340 : vector<8x256xf32>
    %c16_125 = arith.constant 16 : index
    %c112_126 = arith.constant 112 : index
    %342 = vector.load %arg6[%c16_125, %c112_126] : memref<32x512xf32, #tpu.memory_space<vmem>>, vector<8x256xf32>
    %343 = vector.extract_strided_slice %27 {offsets = [0, 6], sizes = [8, 1], strides = [1, 1]} : vector<8x36xf32> to vector<8x1xf32>
    %344 = vector.broadcast %343 : vector<8x1xf32> to vector<8x256xf32>
    %345 = arith.mulf %344, %342 : vector<8x256xf32>
    %346 = arith.addf %341, %345 : vector<8x256xf32>
    %c24_127 = arith.constant 24 : index
    %c112_128 = arith.constant 112 : index
    %347 = vector.load %arg6[%c24_127, %c112_128] : memref<32x512xf32, #tpu.memory_space<vmem>>, vector<8x256xf32>
    %348 = vector.extract_strided_slice %27 {offsets = [0, 7], sizes = [8, 1], strides = [1, 1]} : vector<8x36xf32> to vector<8x1xf32>
    %349 = vector.broadcast %348 : vector<8x1xf32> to vector<8x256xf32>
    %350 = arith.mulf %349, %347 : vector<8x256xf32>
    %351 = arith.addf %346, %350 : vector<8x256xf32>
    %c0_129 = arith.constant 0 : index
    %c113_130 = arith.constant 113 : index
    %352 = vector.load %arg6[%c0_129, %c113_130] : memref<32x512xf32, #tpu.memory_space<vmem>>, vector<8x256xf32>
    %353 = vector.extract_strided_slice %27 {offsets = [0, 8], sizes = [8, 1], strides = [1, 1]} : vector<8x36xf32> to vector<8x1xf32>
    %354 = vector.broadcast %353 : vector<8x1xf32> to vector<8x256xf32>
    %355 = arith.mulf %354, %352 : vector<8x256xf32>
    %356 = arith.addf %311, %355 : vector<8x256xf32>
    %c8_131 = arith.constant 8 : index
    %c113_132 = arith.constant 113 : index
    %357 = vector.load %arg6[%c8_131, %c113_132] : memref<32x512xf32, #tpu.memory_space<vmem>>, vector<8x256xf32>
    %358 = vector.extract_strided_slice %27 {offsets = [0, 9], sizes = [8, 1], strides = [1, 1]} : vector<8x36xf32> to vector<8x1xf32>
    %359 = vector.broadcast %358 : vector<8x1xf32> to vector<8x256xf32>
    %360 = arith.mulf %359, %357 : vector<8x256xf32>
    %361 = arith.addf %356, %360 : vector<8x256xf32>
    %c16_133 = arith.constant 16 : index
    %c113_134 = arith.constant 113 : index
    %362 = vector.load %arg6[%c16_133, %c113_134] : memref<32x512xf32, #tpu.memory_space<vmem>>, vector<8x256xf32>
    %363 = vector.extract_strided_slice %27 {offsets = [0, 10], sizes = [8, 1], strides = [1, 1]} : vector<8x36xf32> to vector<8x1xf32>
    %364 = vector.broadcast %363 : vector<8x1xf32> to vector<8x256xf32>
    %365 = arith.mulf %364, %362 : vector<8x256xf32>
    %366 = arith.addf %361, %365 : vector<8x256xf32>
    %c24_135 = arith.constant 24 : index
    %c113_136 = arith.constant 113 : index
    %367 = vector.load %arg6[%c24_135, %c113_136] : memref<32x512xf32, #tpu.memory_space<vmem>>, vector<8x256xf32>
    %368 = vector.extract_strided_slice %27 {offsets = [0, 11], sizes = [8, 1], strides = [1, 1]} : vector<8x36xf32> to vector<8x1xf32>
    %369 = vector.broadcast %368 : vector<8x1xf32> to vector<8x256xf32>
    %370 = arith.mulf %369, %367 : vector<8x256xf32>
    %371 = arith.addf %366, %370 : vector<8x256xf32>
    %c0_137 = arith.constant 0 : index
    %c127_138 = arith.constant 127 : index
    %372 = vector.load %arg6[%c0_137, %c127_138] : memref<32x512xf32, #tpu.memory_space<vmem>>, vector<8x256xf32>
    %373 = vector.extract_strided_slice %27 {offsets = [0, 12], sizes = [8, 1], strides = [1, 1]} : vector<8x36xf32> to vector<8x1xf32>
    %374 = vector.broadcast %373 : vector<8x1xf32> to vector<8x256xf32>
    %375 = arith.mulf %374, %372 : vector<8x256xf32>
    %376 = arith.addf %331, %375 : vector<8x256xf32>
    %c8_139 = arith.constant 8 : index
    %c127_140 = arith.constant 127 : index
    %377 = vector.load %arg6[%c8_139, %c127_140] : memref<32x512xf32, #tpu.memory_space<vmem>>, vector<8x256xf32>
    %378 = vector.extract_strided_slice %27 {offsets = [0, 13], sizes = [8, 1], strides = [1, 1]} : vector<8x36xf32> to vector<8x1xf32>
    %379 = vector.broadcast %378 : vector<8x1xf32> to vector<8x256xf32>
    %380 = arith.mulf %379, %377 : vector<8x256xf32>
    %381 = arith.addf %376, %380 : vector<8x256xf32>
    %c16_141 = arith.constant 16 : index
    %c127_142 = arith.constant 127 : index
    %382 = vector.load %arg6[%c16_141, %c127_142] : memref<32x512xf32, #tpu.memory_space<vmem>>, vector<8x256xf32>
    %383 = vector.extract_strided_slice %27 {offsets = [0, 14], sizes = [8, 1], strides = [1, 1]} : vector<8x36xf32> to vector<8x1xf32>
    %384 = vector.broadcast %383 : vector<8x1xf32> to vector<8x256xf32>
    %385 = arith.mulf %384, %382 : vector<8x256xf32>
    %386 = arith.addf %381, %385 : vector<8x256xf32>
    %c24_143 = arith.constant 24 : index
    %c127_144 = arith.constant 127 : index
    %387 = vector.load %arg6[%c24_143, %c127_144] : memref<32x512xf32, #tpu.memory_space<vmem>>, vector<8x256xf32>
    %388 = vector.extract_strided_slice %27 {offsets = [0, 15], sizes = [8, 1], strides = [1, 1]} : vector<8x36xf32> to vector<8x1xf32>
    %389 = vector.broadcast %388 : vector<8x1xf32> to vector<8x256xf32>
    %390 = arith.mulf %389, %387 : vector<8x256xf32>
    %391 = arith.addf %386, %390 : vector<8x256xf32>
    %c0_145 = arith.constant 0 : index
    %c128_146 = arith.constant 128 : index
    %392 = vector.load %arg6[%c0_145, %c128_146] : memref<32x512xf32, #tpu.memory_space<vmem>>, vector<8x256xf32>
    %393 = vector.extract_strided_slice %27 {offsets = [0, 16], sizes = [8, 1], strides = [1, 1]} : vector<8x36xf32> to vector<8x1xf32>
    %394 = vector.broadcast %393 : vector<8x1xf32> to vector<8x256xf32>
    %395 = arith.mulf %394, %392 : vector<8x256xf32>
    %396 = arith.addf %351, %395 : vector<8x256xf32>
    %c8_147 = arith.constant 8 : index
    %c128_148 = arith.constant 128 : index
    %397 = vector.load %arg6[%c8_147, %c128_148] : memref<32x512xf32, #tpu.memory_space<vmem>>, vector<8x256xf32>
    %398 = vector.extract_strided_slice %27 {offsets = [0, 17], sizes = [8, 1], strides = [1, 1]} : vector<8x36xf32> to vector<8x1xf32>
    %399 = vector.broadcast %398 : vector<8x1xf32> to vector<8x256xf32>
    %400 = arith.mulf %399, %397 : vector<8x256xf32>
    %401 = arith.addf %396, %400 : vector<8x256xf32>
    %c16_149 = arith.constant 16 : index
    %c128_150 = arith.constant 128 : index
    %402 = vector.load %arg6[%c16_149, %c128_150] : memref<32x512xf32, #tpu.memory_space<vmem>>, vector<8x256xf32>
    %403 = vector.extract_strided_slice %27 {offsets = [0, 18], sizes = [8, 1], strides = [1, 1]} : vector<8x36xf32> to vector<8x1xf32>
    %404 = vector.broadcast %403 : vector<8x1xf32> to vector<8x256xf32>
    %405 = arith.mulf %404, %402 : vector<8x256xf32>
    %406 = arith.addf %401, %405 : vector<8x256xf32>
    %c24_151 = arith.constant 24 : index
    %c128_152 = arith.constant 128 : index
    %407 = vector.load %arg6[%c24_151, %c128_152] : memref<32x512xf32, #tpu.memory_space<vmem>>, vector<8x256xf32>
    %408 = vector.extract_strided_slice %27 {offsets = [0, 19], sizes = [8, 1], strides = [1, 1]} : vector<8x36xf32> to vector<8x1xf32>
    %409 = vector.broadcast %408 : vector<8x1xf32> to vector<8x256xf32>
    %410 = arith.mulf %409, %407 : vector<8x256xf32>
    %411 = arith.addf %406, %410 : vector<8x256xf32>
    %c0_153 = arith.constant 0 : index
    %c129_154 = arith.constant 129 : index
    %412 = vector.load %arg6[%c0_153, %c129_154] : memref<32x512xf32, #tpu.memory_space<vmem>>, vector<8x256xf32>
    %413 = vector.extract_strided_slice %27 {offsets = [0, 20], sizes = [8, 1], strides = [1, 1]} : vector<8x36xf32> to vector<8x1xf32>
    %414 = vector.broadcast %413 : vector<8x1xf32> to vector<8x256xf32>
    %415 = arith.mulf %414, %412 : vector<8x256xf32>
    %416 = arith.addf %371, %415 : vector<8x256xf32>
    %c8_155 = arith.constant 8 : index
    %c129_156 = arith.constant 129 : index
    %417 = vector.load %arg6[%c8_155, %c129_156] : memref<32x512xf32, #tpu.memory_space<vmem>>, vector<8x256xf32>
    %418 = vector.extract_strided_slice %27 {offsets = [0, 21], sizes = [8, 1], strides = [1, 1]} : vector<8x36xf32> to vector<8x1xf32>
    %419 = vector.broadcast %418 : vector<8x1xf32> to vector<8x256xf32>
    %420 = arith.mulf %419, %417 : vector<8x256xf32>
    %421 = arith.addf %416, %420 : vector<8x256xf32>
    %c16_157 = arith.constant 16 : index
    %c129_158 = arith.constant 129 : index
    %422 = vector.load %arg6[%c16_157, %c129_158] : memref<32x512xf32, #tpu.memory_space<vmem>>, vector<8x256xf32>
    %423 = vector.extract_strided_slice %27 {offsets = [0, 22], sizes = [8, 1], strides = [1, 1]} : vector<8x36xf32> to vector<8x1xf32>
    %424 = vector.broadcast %423 : vector<8x1xf32> to vector<8x256xf32>
    %425 = arith.mulf %424, %422 : vector<8x256xf32>
    %426 = arith.addf %421, %425 : vector<8x256xf32>
    %c24_159 = arith.constant 24 : index
    %c129_160 = arith.constant 129 : index
    %427 = vector.load %arg6[%c24_159, %c129_160] : memref<32x512xf32, #tpu.memory_space<vmem>>, vector<8x256xf32>
    %428 = vector.extract_strided_slice %27 {offsets = [0, 23], sizes = [8, 1], strides = [1, 1]} : vector<8x36xf32> to vector<8x1xf32>
    %429 = vector.broadcast %428 : vector<8x1xf32> to vector<8x256xf32>
    %430 = arith.mulf %429, %427 : vector<8x256xf32>
    %431 = arith.addf %426, %430 : vector<8x256xf32>
    %c0_161 = arith.constant 0 : index
    %c143_162 = arith.constant 143 : index
    %432 = vector.load %arg6[%c0_161, %c143_162] : memref<32x512xf32, #tpu.memory_space<vmem>>, vector<8x256xf32>
    %433 = vector.extract_strided_slice %27 {offsets = [0, 24], sizes = [8, 1], strides = [1, 1]} : vector<8x36xf32> to vector<8x1xf32>
    %434 = vector.broadcast %433 : vector<8x1xf32> to vector<8x256xf32>
    %435 = arith.mulf %434, %432 : vector<8x256xf32>
    %436 = arith.addf %391, %435 : vector<8x256xf32>
    %c8_163 = arith.constant 8 : index
    %c143_164 = arith.constant 143 : index
    %437 = vector.load %arg6[%c8_163, %c143_164] : memref<32x512xf32, #tpu.memory_space<vmem>>, vector<8x256xf32>
    %438 = vector.extract_strided_slice %27 {offsets = [0, 25], sizes = [8, 1], strides = [1, 1]} : vector<8x36xf32> to vector<8x1xf32>
    %439 = vector.broadcast %438 : vector<8x1xf32> to vector<8x256xf32>
    %440 = arith.mulf %439, %437 : vector<8x256xf32>
    %441 = arith.addf %436, %440 : vector<8x256xf32>
    %c16_165 = arith.constant 16 : index
    %c143_166 = arith.constant 143 : index
    %442 = vector.load %arg6[%c16_165, %c143_166] : memref<32x512xf32, #tpu.memory_space<vmem>>, vector<8x256xf32>
    %443 = vector.extract_strided_slice %27 {offsets = [0, 26], sizes = [8, 1], strides = [1, 1]} : vector<8x36xf32> to vector<8x1xf32>
    %444 = vector.broadcast %443 : vector<8x1xf32> to vector<8x256xf32>
    %445 = arith.mulf %444, %442 : vector<8x256xf32>
    %446 = arith.addf %441, %445 : vector<8x256xf32>
    %c24_167 = arith.constant 24 : index
    %c143_168 = arith.constant 143 : index
    %447 = vector.load %arg6[%c24_167, %c143_168] : memref<32x512xf32, #tpu.memory_space<vmem>>, vector<8x256xf32>
    %448 = vector.extract_strided_slice %27 {offsets = [0, 27], sizes = [8, 1], strides = [1, 1]} : vector<8x36xf32> to vector<8x1xf32>
    %449 = vector.broadcast %448 : vector<8x1xf32> to vector<8x256xf32>
    %450 = arith.mulf %449, %447 : vector<8x256xf32>
    %451 = arith.addf %446, %450 : vector<8x256xf32>
    %c0_169 = arith.constant 0 : index
    %c144_170 = arith.constant 144 : index
    %452 = vector.load %arg6[%c0_169, %c144_170] : memref<32x512xf32, #tpu.memory_space<vmem>>, vector<8x256xf32>
    %453 = vector.extract_strided_slice %27 {offsets = [0, 28], sizes = [8, 1], strides = [1, 1]} : vector<8x36xf32> to vector<8x1xf32>
    %454 = vector.broadcast %453 : vector<8x1xf32> to vector<8x256xf32>
    %455 = arith.mulf %454, %452 : vector<8x256xf32>
    %456 = arith.addf %411, %455 : vector<8x256xf32>
    %c8_171 = arith.constant 8 : index
    %c144_172 = arith.constant 144 : index
    %457 = vector.load %arg6[%c8_171, %c144_172] : memref<32x512xf32, #tpu.memory_space<vmem>>, vector<8x256xf32>
    %458 = vector.extract_strided_slice %27 {offsets = [0, 29], sizes = [8, 1], strides = [1, 1]} : vector<8x36xf32> to vector<8x1xf32>
    %459 = vector.broadcast %458 : vector<8x1xf32> to vector<8x256xf32>
    %460 = arith.mulf %459, %457 : vector<8x256xf32>
    %461 = arith.addf %456, %460 : vector<8x256xf32>
    %c16_173 = arith.constant 16 : index
    %c144_174 = arith.constant 144 : index
    %462 = vector.load %arg6[%c16_173, %c144_174] : memref<32x512xf32, #tpu.memory_space<vmem>>, vector<8x256xf32>
    %463 = vector.extract_strided_slice %27 {offsets = [0, 30], sizes = [8, 1], strides = [1, 1]} : vector<8x36xf32> to vector<8x1xf32>
    %464 = vector.broadcast %463 : vector<8x1xf32> to vector<8x256xf32>
    %465 = arith.mulf %464, %462 : vector<8x256xf32>
    %466 = arith.addf %461, %465 : vector<8x256xf32>
    %c24_175 = arith.constant 24 : index
    %c144_176 = arith.constant 144 : index
    %467 = vector.load %arg6[%c24_175, %c144_176] : memref<32x512xf32, #tpu.memory_space<vmem>>, vector<8x256xf32>
    %468 = vector.extract_strided_slice %27 {offsets = [0, 31], sizes = [8, 1], strides = [1, 1]} : vector<8x36xf32> to vector<8x1xf32>
    %469 = vector.broadcast %468 : vector<8x1xf32> to vector<8x256xf32>
    %470 = arith.mulf %469, %467 : vector<8x256xf32>
    %471 = arith.addf %466, %470 : vector<8x256xf32>
    %c0_177 = arith.constant 0 : index
    %c145_178 = arith.constant 145 : index
    %472 = vector.load %arg6[%c0_177, %c145_178] : memref<32x512xf32, #tpu.memory_space<vmem>>, vector<8x256xf32>
    %473 = vector.extract_strided_slice %27 {offsets = [0, 32], sizes = [8, 1], strides = [1, 1]} : vector<8x36xf32> to vector<8x1xf32>
    %474 = vector.broadcast %473 : vector<8x1xf32> to vector<8x256xf32>
    %475 = arith.mulf %474, %472 : vector<8x256xf32>
    %476 = arith.addf %431, %475 : vector<8x256xf32>
    %c8_179 = arith.constant 8 : index
    %c145_180 = arith.constant 145 : index
    %477 = vector.load %arg6[%c8_179, %c145_180] : memref<32x512xf32, #tpu.memory_space<vmem>>, vector<8x256xf32>
    %478 = vector.extract_strided_slice %27 {offsets = [0, 33], sizes = [8, 1], strides = [1, 1]} : vector<8x36xf32> to vector<8x1xf32>
    %479 = vector.broadcast %478 : vector<8x1xf32> to vector<8x256xf32>
    %480 = arith.mulf %479, %477 : vector<8x256xf32>
    %481 = arith.addf %476, %480 : vector<8x256xf32>
    %c16_181 = arith.constant 16 : index
    %c145_182 = arith.constant 145 : index
    %482 = vector.load %arg6[%c16_181, %c145_182] : memref<32x512xf32, #tpu.memory_space<vmem>>, vector<8x256xf32>
    %483 = vector.extract_strided_slice %27 {offsets = [0, 34], sizes = [8, 1], strides = [1, 1]} : vector<8x36xf32> to vector<8x1xf32>
    %484 = vector.broadcast %483 : vector<8x1xf32> to vector<8x256xf32>
    %485 = arith.mulf %484, %482 : vector<8x256xf32>
    %486 = arith.addf %481, %485 : vector<8x256xf32>
    %c24_183 = arith.constant 24 : index
    %c145_184 = arith.constant 145 : index
    %487 = vector.load %arg6[%c24_183, %c145_184] : memref<32x512xf32, #tpu.memory_space<vmem>>, vector<8x256xf32>
    %488 = vector.extract_strided_slice %27 {offsets = [0, 35], sizes = [8, 1], strides = [1, 1]} : vector<8x36xf32> to vector<8x1xf32>
    %489 = vector.broadcast %488 : vector<8x1xf32> to vector<8x256xf32>
    %490 = arith.mulf %489, %487 : vector<8x256xf32>
    %491 = arith.addf %486, %490 : vector<8x256xf32>
    %492 = vector.broadcast %20 : vector<1x256xf32> to vector<8x256xf32>
    %493 = arith.mulf %451, %492 : vector<8x256xf32>
    %494 = arith.addf %471, %493 : vector<8x256xf32>
    %495 = vector.broadcast %24 : vector<1x256xf32> to vector<8x256xf32>
    %496 = arith.mulf %491, %495 : vector<8x256xf32>
    %497 = arith.addf %494, %496 : vector<8x256xf32>
    %498 = vector.extract_strided_slice %28 {offsets = [0, 2], sizes = [8, 1], strides = [1, 1]} : vector<8x4xf32> to vector<8x1xf32>
    %499 = vector.extract_strided_slice %28 {offsets = [0, 3], sizes = [8, 1], strides = [1, 1]} : vector<8x4xf32> to vector<8x1xf32>
    %cst_185 = arith.constant dense<0.000000e+00> : vector<8xf32>
    %500 = vector.multi_reduction <add>, %497, %cst_185 [1] : vector<8x256xf32> to vector<8xf32>
    %501 = vector.shape_cast %500 : vector<8xf32> to vector<8x1xf32>
    %502 = arith.mulf %497, %497 : vector<8x256xf32>
    %cst_186 = arith.constant dense<0.000000e+00> : vector<8xf32>
    %503 = vector.multi_reduction <add>, %502, %cst_186 [1] : vector<8x256xf32> to vector<8xf32>
    %504 = vector.shape_cast %503 : vector<8xf32> to vector<8x1xf32>
    %cst_187 = arith.constant 3.906250e-03 : f32
    %505 = vector.broadcast %cst_187 : f32 to vector<8x1xf32>
    %506 = arith.mulf %501, %505 : vector<8x1xf32>
    %cst_188 = arith.constant 3.906250e-03 : f32
    %507 = vector.broadcast %cst_188 : f32 to vector<8x1xf32>
    %508 = arith.mulf %504, %507 : vector<8x1xf32>
    %509 = arith.mulf %506, %506 : vector<8x1xf32>
    %510 = arith.subf %508, %509 : vector<8x1xf32>
    %cst_189 = arith.constant 9.99999974E-6 : f32
    %511 = vector.broadcast %cst_189 : f32 to vector<8x1xf32>
    %512 = arith.addf %510, %511 : vector<8x1xf32>
    %513 = math.rsqrt %512 : vector<8x1xf32>
    %514 = arith.mulf %498, %513 : vector<8x1xf32>
    %515 = vector.broadcast %514 : vector<8x1xf32> to vector<8x256xf32>
    %516 = arith.mulf %497, %515 : vector<8x256xf32>
    %517 = arith.mulf %506, %514 : vector<8x1xf32>
    %518 = arith.subf %499, %517 : vector<8x1xf32>
    %519 = vector.broadcast %518 : vector<8x1xf32> to vector<8x256xf32>
    %520 = arith.addf %516, %519 : vector<8x256xf32>
    %521 = arith.addf %25, %520 : vector<8x256xf32>
    %c0_190 = arith.constant 0 : index
    %c0_191 = arith.constant 0 : index
    %522 = vector.load %arg5[%c0_190, %c0_191] : memref<8x256xf32, #tpu.memory_space<vmem>>, vector<8x256xf32>
    tpu.vector_store %arg5[%c0_190, %c0_191], %521 {strides = array<i32>} : memref<8x256xf32, #tpu.memory_space<vmem>>, vector<8x256xf32>,
    return
  }
  func.func @transform_0(%arg0: i32) -> (i32, i32) {
    %c0_i32 = arith.constant 0 : i32
    %c0_i32_0 = arith.constant 0 : i32
    %c0_i32_1 = arith.constant 0 : i32
    return %c0_i32, %c0_i32_0 : i32, i32
  }
  func.func @transform_1(%arg0: i32) -> (i32, i32) {
    %c0_i32 = arith.constant 0 : i32
    %c0_i32_0 = arith.constant 0 : i32
    %c0_i32_1 = arith.constant 0 : i32
    return %c0_i32, %c0_i32_0 : i32, i32
  }
  func.func @transform_2(%arg0: i32) -> (i32, i32) {
    %c0_i32 = arith.constant 0 : i32
    %c0_i32_0 = arith.constant 0 : i32
    %c0_i32_1 = arith.constant 0 : i32
    return %c0_i32, %c0_i32_0 : i32, i32
  }
  func.func @transform_3(%arg0: i32) -> (i32, i32) {
    %c0_i32 = arith.constant 0 : i32
    %c0_i32_0 = arith.constant 0 : i32
    %c0_i32_1 = arith.constant 0 : i32
    return %c0_i32, %c0_i32_0 : i32, i32
  }
  func.func @transform_4(%arg0: i32) -> (i32, i32) {
    %c0_i32 = arith.constant 0 : i32
    %c0_i32_0 = arith.constant 0 : i32
    %c0_i32_1 = arith.constant 0 : i32
    return %c0_i32, %c0_i32_0 : i32, i32
  }
}

</mosaic_0001>

<llo_original>
// kernel: tile.31
$region0: #{tile.31}
  #allocation0 [shape = 's32[1]{0}', space=sflag, size = 0x4, scoped, tag = 'scoped memory for tile.31']
  %s0 = inlined_call_operand.vmem [shape: f32[4], index: 0, kind: input, shape index: {}]
  %s1 = inlined_call_operand.vmem [shape: f32[2,4], index: 1, kind: output, shape index: {}]
  // Predicated region
  $region2: #{tile.31} parent=0 // pred_check
    _
  $region3: #{tile.31} parent=0 // pred_check_branch
    %3 = sbr.rel (0) target = $region5
  $region4: #{tile.31} parent=0 // pred_region
    _
  $region5: #{tile.31} parent=0 // pred_fallthru
    _
  %v4 = vld [vmem:[%s0] ss:$0 sm:$0xff]
  %5 = vst [vmem:[%s1] sm:$0x3] %v4

// kernel: tile.3
$region0: #{tile.3}
  %s0 = inlined_call_operand.vmem [shape: f32[2,4], index: 0, kind: input, shape index: {}]
  %s1 = inlined_call_operand.vmem [shape: f32[8,1], index: 1, kind: output, shape index: {}]
  $region1: #{tile.3} parent=0
    #allocation0 [shape = 'u8[4096]{0}', space=vmem, size = 0x1000, scoped, tag = 'scoped mem for input reshape']
    %s3 = sshllo.u32 0, 2
    %v4 = vld [vmem:[%s0] sm:%s3]
    %5 = vst [vmem:[#allocation0] sm:%s3] %v4
    %v6 = vld [vmem:[#allocation0] sm:$0x3]
    %vm7 = vcmask 7168
    %8 = vst.msk [vmem:[%s1] ss:$4 sm:$0x3] %vm7, %v6
    %v9 = vld [vmem:[#allocation0] sm:$0x3]
    %10 = vrot.lane.b32.xlu0 %v9, 127
    %v11 = vpop.permute.xlu0 %10
    %vm12 = vcmask 7168
    %s13 = scalar_lea.vmem %s1, 1
    %14 = vst.msk [vmem:[%s13] ss:$4 sm:$0x3] %vm12, %v11
    %v15 = vld [vmem:[#allocation0] sm:$0x3]
    %16 = vrot.lane.b32.xlu0 %v15, 126
    %v17 = vpop.permute.xlu0 %16
    %vm18 = vcmask 7168
    %s19 = scalar_lea.vmem %s1, 2
    %20 = vst.msk [vmem:[%s19] ss:$4 sm:$0x3] %vm18, %v17
    %v21 = vld [vmem:[#allocation0] sm:$0x3]
    %22 = vrot.lane.b32.xlu0 %v21, 125
    %v23 = vpop.permute.xlu0 %22
    %vm24 = vcmask 7168
    %s25 = scalar_lea.vmem %s1, 3
    %26 = vst.msk [vmem:[%s25] ss:$4 sm:$0x3] %vm24, %v23

// kernel: resblock_forward.1
$region0: #{resblock_forward.1}
  #allocation0 [shape = 'u32[]', space=smem, size = 0x4, offset = 0x4, fixed_abs, tag = 'smem constant byte address 0x4 - core index']
  #allocation1 [shape = 'u32[144,128]{1,0:T(1,128)}', space=vmem, size = 0x12000, scoped, tag = 'internal scratch']
  #allocation2 [shape = 'f32[32,512]{1,0:T(8,128)}', space=vmem, size = 0x10000, scoped, tag = 'scratch operand']
  %s0 = inlined_call_operand.vmem [shape: f32[8,256], index: 0, kind: input, shape index: {}]
  %s1 = inlined_call_operand.vmem [shape: f32[8,36], index: 1, kind: input, shape index: {}]
  %s2 = inlined_call_operand.vmem [shape: f32[8,36], index: 2, kind: input, shape index: {}]
  %s3 = inlined_call_operand.vmem [shape: f32[8,4], index: 3, kind: input, shape index: {}]
  %s4 = inlined_call_operand.vmem [shape: f32[8,256], index: 4, kind: output, shape index: {}]
  %s5 = sld [smem:[#allocation0]]
  $region26: #{resblock_forward.1} parent=0
    _
  %s7 = ssub.s32 1, %s5
  %s8 = scalar_select 0, %s7, %s5
  // Predicated region
  $region2: #{resblock_forward.1} parent=0 // pred_check
    _
  $region3: #{resblock_forward.1} parent=0 // pred_check_branch
    %10 = sbr.rel (0) target = $region5
  $region4: #{resblock_forward.1} parent=0 // pred_region
    _
  $region5: #{resblock_forward.1} parent=0 // pred_fallthru
    _
  // Predicated region
  $region6: #{resblock_forward.1} parent=0 // pred_check
    _
  $region7: #{resblock_forward.1} parent=0 // pred_check_branch
    %12 = sbr.rel (0) target = $region9
  $region8: #{resblock_forward.1} parent=0 // pred_region
    _
  $region9: #{resblock_forward.1} parent=0 // pred_fallthru
    _
  // Predicated region
  $region10: #{resblock_forward.1} parent=0 // pred_check
    _
  $region11: #{resblock_forward.1} parent=0 // pred_check_branch
    %14 = sbr.rel (0) target = $region13
  $region12: #{resblock_forward.1} parent=0 // pred_region
    _
  $region13: #{resblock_forward.1} parent=0 // pred_fallthru
    _
  // Predicated region
  $region14: #{resblock_forward.1} parent=0 // pred_check
    _
  $region15: #{resblock_forward.1} parent=0 // pred_check_branch
    %16 = sbr.rel (0) target = $region17
  $region16: #{resblock_forward.1} parent=0 // pred_region
    _
  $region17: #{resblock_forward.1} parent=0 // pred_fallthru
    _
  %v17 = vlaneseq
  %v18 = vand.u32 %v17, 127
  %v19 = vadd.s32 %v18, 128
  %vm20 = vcmp.lt.s32.totalorder %v18, 0
  %v21 = vsub.s32 0, %v18
  %v22 = vsel %vm20, %v21, %v18
  %v23 = vshrl.u32 %v22, 4
  %v24 = vand.u32 %v22, 15
  %v25 = vsub.s32 0, %v24
  %v26 = vsel %vm20, %v25, %v24
  %vm27 = vcmp.lt.s32.totalorder %v19, 0
  %v28 = vsub.s32 0, %v19
  %v29 = vsel %vm27, %v28, %v19
  %v30 = vshrl.u32 %v29, 4
  %v31 = vand.u32 %v29, 15
  %v32 = vsub.s32 0, %v31
  %v33 = vsel %vm27, %v32, %v31
  %vm34 = vcmp.ne.s32.totalorder %v26, 0
  %vm35 = vcmp.ne.s32.totalorder %v33, 0
  %vm36 = vcmp.lt.s32.totalorder %v26, 0
  %vm37 = vcmp.lt.s32.totalorder %v33, 0
  %vm38 = vmand %vm36, %vm34
  %vm39 = vmand %vm37, %vm35
  %v40 = vadd.s32 %v26, 16
  %v41 = vadd.s32 %v33, 16
  %v42 = vsel %vm38, %v40, %v26
  %v43 = vsel %vm39, %v41, %v33
  %vm44 = vcmp.ge.s32.totalorder %v42, 1
  %vm45 = vcmp.ge.s32.totalorder %v43, 1
  %v46 = vsel %vm44, 1, 0
  %v47 = vsel %vm45, 1, 0
  %v48 = vcvt.s32.f32 %v46
  %v49 = vcvt.s32.f32 %v47
  %vm50 = vcmp.le.s32.totalorder %v42, 14
  %vm51 = vcmp.le.s32.totalorder %v43, 14
  %v52 = vsel %vm50, 1, 0
  %v53 = vsel %vm51, 1, 0
  %v54 = vcvt.s32.f32 %v52
  %v55 = vcvt.s32.f32 %v53
  %v56 = vld [vmem:[%s0] sm:$0xff]
  %v57 = vld [vmem:[%s0 + $0x8] sm:$0xff]
  %v58 = vld [vmem:[%s1] sm:$0xff]
  %v59 = vld [vmem:[%s2] sm:$0xff]
  %v60 = vld [vmem:[%s3] sm:$0xff]
  %61 = vst [vmem:[#allocation2] sm:$0xff] 0.0
  %62 = vst [vmem:[#allocation2 + $0x8] sm:$0xff] 0.0
  %63 = vst [vmem:[#allocation2 + $0x10] sm:$0xff] 0.0
  %64 = vst [vmem:[#allocation2 + $0x18] sm:$0xff] 0.0
  %65 = vst [vmem:[#allocation2 + $0x20] sm:$0xff] 0.0
  %66 = vst [vmem:[#allocation2 + $0x28] sm:$0xff] 0.0
  %67 = vst [vmem:[#allocation2 + $0x30] sm:$0xff] 0.0
  %68 = vst [vmem:[#allocation2 + $0x38] sm:$0xff] 0.0
  %69 = vst [vmem:[#allocation2 + $0x40] sm:$0xff] 0.0
  %70 = vst [vmem:[#allocation2 + $0x48] sm:$0xff] 0.0
  %71 = vst [vmem:[#allocation2 + $0x50] sm:$0xff] 0.0
  %72 = vst [vmem:[#allocation2 + $0x58] sm:$0xff] 0.0
  %73 = vst [vmem:[#allocation2 + $0x60] sm:$0xff] 0.0
  %74 = vst [vmem:[#allocation2 + $0x68] sm:$0xff] 0.0
  %75 = vst [vmem:[#allocation2 + $0x70] sm:$0xff] 0.0
  %76 = vst [vmem:[#allocation2 + $0x78] sm:$0xff] 0.0
  %v77 = vlaneseq
  %v78 = vshrl.u32 %v77, 7
  %v79 = vsub.s32 0, %v78
  %v80 = vrot.slane %v56, %v79
  %v81 = vlaneseq
  %v82 = vshrl.u32 %v81, 7
  %v83 = vsub.s32 0, %v82
  %v84 = vrot.slane %v57, %v83
  %85 = vst [vmem:[#allocation2 + $0x8] sm:$0xf] %v80
  %86 = vst [vmem:[#allocation2 + $0x10] sm:$0xf] %v84
  %v87 = vlaneseq
  %v88 = vshrl.u32 %v87, 7
  %v89 = vsub.s32 4, %v88
  %v90 = vrot.slane %v56, %v89
  %v91 = vlaneseq
  %v92 = vshrl.u32 %v91, 7
  %v93 = vsub.s32 4, %v92
  %v94 = vrot.slane %v57, %v93
  %95 = vst [vmem:[#allocation2 + $0x8] sm:$0xf0] %v90
  %96 = vst [vmem:[#allocation2 + $0x10] sm:$0xf0] %v94
  %v97 = vlaneseq
  %v98 = vshrl.u32 %v97, 7
  %v99 = vsub.s32 1, %v98
  %v100 = vrot.slane %v56, %v99
  %v101 = vlaneseq
  %v102 = vshrl.u32 %v101, 7
  %v103 = vsub.s32 1, %v102
  %v104 = vrot.slane %v57, %v103
  %105 = vst [vmem:[#allocation2 + $0x28] sm:$0xf] %v100
  %106 = vst [vmem:[#allocation2 + $0x30] sm:$0xf] %v104
  %v107 = vlaneseq
  %v108 = vshrl.u32 %v107, 7
  %v109 = vsub.s32 5, %v108
  %v110 = vrot.slane %v56, %v109
  %v111 = vlaneseq
  %v112 = vshrl.u32 %v111, 7
  %v113 = vsub.s32 5, %v112
  %v114 = vrot.slane %v57, %v113
  %115 = vst [vmem:[#allocation2 + $0x28] sm:$0xf0] %v110
  %116 = vst [vmem:[#allocation2 + $0x30] sm:$0xf0] %v114
  %v117 = vlaneseq
  %v118 = vshrl.u32 %v117, 7
  %v119 = vsub.s32 2, %v118
  %v120 = vrot.slane %v56, %v119
  %v121 = vlaneseq
  %v122 = vshrl.u32 %v121, 7
  %v123 = vsub.s32 2, %v122
  %v124 = vrot.slane %v57, %v123
  %125 = vst [vmem:[#allocation2 + $0x48] sm:$0xf] %v120
  %126 = vst [vmem:[#allocation2 + $0x50] sm:$0xf] %v124
  %v127 = vlaneseq
  %v128 = vshrl.u32 %v127, 7
  %v129 = vsub.s32 6, %v128
  %v130 = vrot.slane %v56, %v129
  %v131 = vlaneseq
  %v132 = vshrl.u32 %v131, 7
  %v133 = vsub.s32 6, %v132
  %v134 = vrot.slane %v57, %v133
  %135 = vst [vmem:[#allocation2 + $0x48] sm:$0xf0] %v130
  %136 = vst [vmem:[#allocation2 + $0x50] sm:$0xf0] %v134
  %v137 = vlaneseq
  %v138 = vshrl.u32 %v137, 7
  %v139 = vsub.s32 3, %v138
  %v140 = vrot.slane %v56, %v139
  %v141 = vlaneseq
  %v142 = vshrl.u32 %v141, 7
  %v143 = vsub.s32 3, %v142
  %v144 = vrot.slane %v57, %v143
  %145 = vst [vmem:[#allocation2 + $0x68] sm:$0xf] %v140
  %146 = vst [vmem:[#allocation2 + $0x70] sm:$0xf] %v144
  %v147 = vlaneseq
  %v148 = vshrl.u32 %v147, 7
  %v149 = vsub.s32 7, %v148
  %v150 = vrot.slane %v56, %v149
  %v151 = vlaneseq
  %v152 = vshrl.u32 %v151, 7
  %v153 = vsub.s32 7, %v152
  %v154 = vrot.slane %v57, %v153
  %155 = vst [vmem:[#allocation2 + $0x68] sm:$0xf0] %v150
  %156 = vst [vmem:[#allocation2 + $0x70] sm:$0xf0] %v154
  %v157 = vld [vmem:[#allocation2] sm:$0xff]
  %v158 = vld [vmem:[#allocation2 + $0x8] sm:$0xff]
  %v159 = vld [vmem:[#allocation2 + $0x10] sm:$0xff]
  %161 = vset.pattern.permute.xlu0 0
  %162 = vperm.xlu0 %161, %v58
  %v163 = vpop.permute.xlu0 %162
  %v165 = vmul.f32 %v163, %v157
  %v166 = vmul.f32 %v163, %v158
  %v167 = vmul.f32 %v163, %v159
  %v168 = vadd.f32 %v165, 0.0
  %v169 = vadd.f32 %v166, 0.0
  %v170 = vadd.f32 %v167, 0.0
  %v171 = vld [vmem:[#allocation2 + $0x20] sm:$0xff]
  %v172 = vld [vmem:[#allocation2 + $0x28] sm:$0xff]
  %v173 = vld [vmem:[#allocation2 + $0x30] sm:$0xff]
  %174 = vset.pattern.permute.xlu0 1
  %175 = vperm.xlu0 %174, %v58
  %v176 = vpop.permute.xlu0 %175
  %v178 = vmul.f32 %v176, %v171
  %v179 = vmul.f32 %v176, %v172
  %v180 = vmul.f32 %v176, %v173
  %v181 = vadd.f32 %v168, %v178
  %v182 = vadd.f32 %v169, %v179
  %v183 = vadd.f32 %v170, %v180
  %v184 = vld [vmem:[#allocation2 + $0x40] sm:$0xff]
  %v185 = vld [vmem:[#allocation2 + $0x48] sm:$0xff]
  %v186 = vld [vmem:[#allocation2 + $0x50] sm:$0xff]
  %187 = vset.pattern.permute.xlu0 2
  %188 = vperm.xlu0 %187, %v58
  %v189 = vpop.permute.xlu0 %188
  %v191 = vmul.f32 %v189, %v184
  %v192 = vmul.f32 %v189, %v185
  %v193 = vmul.f32 %v189, %v186
  %v194 = vadd.f32 %v181, %v191
  %v195 = vadd.f32 %v182, %v192
  %v196 = vadd.f32 %v183, %v193
  %v197 = vld [vmem:[#allocation2 + $0x60] sm:$0xff]
  %v198 = vld [vmem:[#allocation2 + $0x68] sm:$0xff]
  %v199 = vld [vmem:[#allocation2 + $0x70] sm:$0xff]
  %200 = vset.pattern.permute.xlu0 3
  %201 = vperm.xlu0 %200, %v58
  %v202 = vpop.permute.xlu0 %201
  %v204 = vmul.f32 %v202, %v197
  %v205 = vmul.f32 %v202, %v198
  %v206 = vmul.f32 %v202, %v199
  %v207 = vadd.f32 %v194, %v204
  %v208 = vadd.f32 %v195, %v205
  %v209 = vadd.f32 %v196, %v206
  %210 = vset.pattern.permute.xlu0 4
  %211 = vperm.xlu0 %210, %v58
  %v212 = vpop.permute.xlu0 %211
  %v214 = vmul.f32 %v212, %v157
  %v215 = vmul.f32 %v212, %v158
  %v216 = vmul.f32 %v212, %v159
  %v217 = vadd.f32 %v214, 0.0
  %v218 = vadd.f32 %v215, 0.0
  %v219 = vadd.f32 %v216, 0.0
  %220 = vset.pattern.permute.xlu0 5
  %221 = vperm.xlu0 %220, %v58
  %v222 = vpop.permute.xlu0 %221
  %v224 = vmul.f32 %v222, %v171
  %v225 = vmul.f32 %v222, %v172
  %v226 = vmul.f32 %v222, %v173
  %v227 = vadd.f32 %v217, %v224
  %v228 = vadd.f32 %v218, %v225
  %v229 = vadd.f32 %v219, %v226
  %230 = vset.pattern.permute.xlu0 6
  %231 = vperm.xlu0 %230, %v58
  %v232 = vpop.permute.xlu0 %231
  %v234 = vmul.f32 %v232, %v184
  %v235 = vmul.f32 %v232, %v185
  %v236 = vmul.f32 %v232, %v186
  %v237 = vadd.f32 %v227, %v234
  %v238 = vadd.f32 %v228, %v235
  %v239 = vadd.f32 %v229, %v236
  %240 = vset.pattern.permute.xlu0 7
  %241 = vperm.xlu0 %240, %v58
  %v242 = vpop.permute.xlu0 %241
  %v244 = vmul.f32 %v242, %v197
  %v245 = vmul.f32 %v242, %v198
  %v246 = vmul.f32 %v242, %v199
  %v247 = vadd.f32 %v237, %v244
  %v248 = vadd.f32 %v238, %v245
  %v249 = vadd.f32 %v239, %v246
  %250 = vset.pattern.permute.xlu0 8
  %251 = vperm.xlu0 %250, %v58
  %v252 = vpop.permute.xlu0 %251
  %v254 = vmul.f32 %v252, %v157
  %v255 = vmul.f32 %v252, %v158
  %v256 = vmul.f32 %v252, %v159
  %v257 = vadd.f32 %v254, 0.0
  %v258 = vadd.f32 %v255, 0.0
  %v259 = vadd.f32 %v256, 0.0
  %260 = vset.pattern.permute.xlu0 9
  %261 = vperm.xlu0 %260, %v58
  %v262 = vpop.permute.xlu0 %261
  %v264 = vmul.f32 %v262, %v171
  %v265 = vmul.f32 %v262, %v172
  %v266 = vmul.f32 %v262, %v173
  %v267 = vadd.f32 %v257, %v264
  %v268 = vadd.f32 %v258, %v265
  %v269 = vadd.f32 %v259, %v266
  %270 = vset.pattern.permute.xlu0 10
  %271 = vperm.xlu0 %270, %v58
  %v272 = vpop.permute.xlu0 %271
  %v274 = vmul.f32 %v272, %v184
  %v275 = vmul.f32 %v272, %v185
  %v276 = vmul.f32 %v272, %v186
  %v277 = vadd.f32 %v267, %v274
  %v278 = vadd.f32 %v268, %v275
  %v279 = vadd.f32 %v269, %v276
  %280 = vset.pattern.permute.xlu0 11
  %281 = vperm.xlu0 %280, %v58
  %v282 = vpop.permute.xlu0 %281
  %v284 = vmul.f32 %v282, %v197
  %v285 = vmul.f32 %v282, %v198
  %v286 = vmul.f32 %v282, %v199
  %v287 = vadd.f32 %v277, %v284
  %v288 = vadd.f32 %v278, %v285
  %v289 = vadd.f32 %v279, %v286
  %290 = vset.pattern.permute.xlu0 12
  %291 = vperm.xlu0 %290, %v58
  %v292 = vpop.permute.xlu0 %291
  %v294 = vmul.f32 %v292, %v157
  %v295 = vmul.f32 %v292, %v158
  %v296 = vmul.f32 %v292, %v159
  %300 = vrot.lane.b32.xlu0 %v294, 112
  %v301 = vpop.permute.xlu0 %300
  %302 = vrot.lane.b32.xlu0 %v295, 112
  %v303 = vpop.permute.xlu0 %302
  %304 = vrot.lane.b32.xlu0 %v296, 112
  %v305 = vpop.permute.xlu0 %304
  %vm306 = vcmask 916480
  %v307 = vsel %vm306, %v301, %v303
  %v308 = vsel %vm306, %v303, %v305
  %v312 = vadd.f32 %v207, %v307
  %v313 = vadd.f32 %v208, %v308
  %v314 = vadd.f32 %v209, %v305
  %315 = vset.pattern.permute.xlu0 13
  %316 = vperm.xlu0 %315, %v58
  %v317 = vpop.permute.xlu0 %316
  %v319 = vmul.f32 %v317, %v171
  %v320 = vmul.f32 %v317, %v172
  %v321 = vmul.f32 %v317, %v173
  %325 = vrot.lane.b32.xlu0 %v319, 112
  %v326 = vpop.permute.xlu0 %325
  %327 = vrot.lane.b32.xlu0 %v320, 112
  %v328 = vpop.permute.xlu0 %327
  %329 = vrot.lane.b32.xlu0 %v321, 112
  %v330 = vpop.permute.xlu0 %329
  %v331 = vsel %vm306, %v326, %v328
  %v332 = vsel %vm306, %v328, %v330
  %v336 = vadd.f32 %v312, %v331
  %v337 = vadd.f32 %v313, %v332
  %v338 = vadd.f32 %v314, %v330
  %339 = vset.pattern.permute.xlu0 14
  %340 = vperm.xlu0 %339, %v58
  %v341 = vpop.permute.xlu0 %340
  %v343 = vmul.f32 %v341, %v184
  %v344 = vmul.f32 %v341, %v185
  %v345 = vmul.f32 %v341, %v186
  %349 = vrot.lane.b32.xlu0 %v343, 112
  %v350 = vpop.permute.xlu0 %349
  %351 = vrot.lane.b32.xlu0 %v344, 112
  %v352 = vpop.permute.xlu0 %351
  %353 = vrot.lane.b32.xlu0 %v345, 112
  %v354 = vpop.permute.xlu0 %353
  %v355 = vsel %vm306, %v350, %v352
  %v356 = vsel %vm306, %v352, %v354
  %v360 = vadd.f32 %v336, %v355
  %v361 = vadd.f32 %v337, %v356
  %v362 = vadd.f32 %v338, %v354
  %363 = vset.pattern.permute.xlu0 15
  %364 = vperm.xlu0 %363, %v58
  %v365 = vpop.permute.xlu0 %364
  %v367 = vmul.f32 %v365, %v197
  %v368 = vmul.f32 %v365, %v198
  %v369 = vmul.f32 %v365, %v199
  %373 = vrot.lane.b32.xlu0 %v367, 112
  %v374 = vpop.permute.xlu0 %373
  %375 = vrot.lane.b32.xlu0 %v368, 112
  %v376 = vpop.permute.xlu0 %375
  %377 = vrot.lane.b32.xlu0 %v369, 112
  %v378 = vpop.permute.xlu0 %377
  %v379 = vsel %vm306, %v374, %v376
  %v380 = vsel %vm306, %v376, %v378
  %v384 = vadd.f32 %v360, %v379
  %v385 = vadd.f32 %v361, %v380
  %v386 = vadd.f32 %v362, %v378
  %387 = vset.pattern.permute.xlu0 16
  %388 = vperm.xlu0 %387, %v58
  %v389 = vpop.permute.xlu0 %388
  %v391 = vmul.f32 %v389, %v158
  %v392 = vmul.f32 %v389, %v159
  %395 = vrot.lane.b32.xlu0 %v391, 112
  %v396 = vpop.permute.xlu0 %395
  %397 = vrot.lane.b32.xlu0 %v392, 112
  %v398 = vpop.permute.xlu0 %397
  %v399 = vsel %vm306, %v396, %v398
  %v403 = vadd.f32 %v247, %v396
  %v404 = vadd.f32 %v248, %v399
  %v405 = vadd.f32 %v249, %v398
  %406 = vset.pattern.permute.xlu0 17
  %407 = vperm.xlu0 %406, %v58
  %v408 = vpop.permute.xlu0 %407
  %v410 = vmul.f32 %v408, %v172
  %v411 = vmul.f32 %v408, %v173
  %414 = vrot.lane.b32.xlu0 %v410, 112
  %v415 = vpop.permute.xlu0 %414
  %416 = vrot.lane.b32.xlu0 %v411, 112
  %v417 = vpop.permute.xlu0 %416
  %v418 = vsel %vm306, %v415, %v417
  %v422 = vadd.f32 %v403, %v415
  %v423 = vadd.f32 %v404, %v418
  %v424 = vadd.f32 %v405, %v417
  %425 = vset.pattern.permute.xlu0 18
  %426 = vperm.xlu0 %425, %v58
  %v427 = vpop.permute.xlu0 %426
  %v429 = vmul.f32 %v427, %v185
  %v430 = vmul.f32 %v427, %v186
  %433 = vrot.lane.b32.xlu0 %v429, 112
  %v434 = vpop.permute.xlu0 %433
  %435 = vrot.lane.b32.xlu0 %v430, 112
  %v436 = vpop.permute.xlu0 %435
  %v437 = vsel %vm306, %v434, %v436
  %v441 = vadd.f32 %v422, %v434
  %v442 = vadd.f32 %v423, %v437
  %v443 = vadd.f32 %v424, %v436
  %444 = vset.pattern.permute.xlu0 19
  %445 = vperm.xlu0 %444, %v58
  %v446 = vpop.permute.xlu0 %445
  %v448 = vmul.f32 %v446, %v198
  %v449 = vmul.f32 %v446, %v199
  %452 = vrot.lane.b32.xlu0 %v448, 112
  %v453 = vpop.permute.xlu0 %452
  %454 = vrot.lane.b32.xlu0 %v449, 112
  %v455 = vpop.permute.xlu0 %454
  %v456 = vsel %vm306, %v453, %v455
  %v460 = vadd.f32 %v441, %v453
  %v461 = vadd.f32 %v442, %v456
  %v462 = vadd.f32 %v443, %v455
  %v463 = vld [vmem:[#allocation2 + $0x8] sm:$0xff]
  %v464 = vld [vmem:[#allocation2 + $0x10] sm:$0xff]
  %v465 = vld [vmem:[#allocation2 + $0x18] sm:$0xff]
  %466 = vset.pattern.permute.xlu0 20
  %467 = vperm.xlu0 %466, %v58
  %v468 = vpop.permute.xlu0 %467
  %v470 = vmul.f32 %v468, %v463
  %v471 = vmul.f32 %v468, %v464
  %v472 = vmul.f32 %v468, %v465
  %476 = vrot.lane.b32.xlu0 %v470, 112
  %v477 = vpop.permute.xlu0 %476
  %478 = vrot.lane.b32.xlu0 %v471, 112
  %v479 = vpop.permute.xlu0 %478
  %480 = vrot.lane.b32.xlu0 %v472, 112
  %v481 = vpop.permute.xlu0 %480
  %v482 = vsel %vm306, %v477, %v479
  %v483 = vsel %vm306, %v479, %v481
  %v487 = vadd.f32 %v287, %v477
  %v488 = vadd.f32 %v288, %v482
  %v489 = vadd.f32 %v289, %v483
  %v490 = vld [vmem:[#allocation2 + $0x28] sm:$0xff]
  %v491 = vld [vmem:[#allocation2 + $0x30] sm:$0xff]
  %v492 = vld [vmem:[#allocation2 + $0x38] sm:$0xff]
  %493 = vset.pattern.permute.xlu0 21
  %494 = vperm.xlu0 %493, %v58
  %v495 = vpop.permute.xlu0 %494
  %v497 = vmul.f32 %v495, %v490
  %v498 = vmul.f32 %v495, %v491
  %v499 = vmul.f32 %v495, %v492
  %503 = vrot.lane.b32.xlu0 %v497, 112
  %v504 = vpop.permute.xlu0 %503
  %505 = vrot.lane.b32.xlu0 %v498, 112
  %v506 = vpop.permute.xlu0 %505
  %507 = vrot.lane.b32.xlu0 %v499, 112
  %v508 = vpop.permute.xlu0 %507
  %v509 = vsel %vm306, %v504, %v506
  %v510 = vsel %vm306, %v506, %v508
  %v514 = vadd.f32 %v487, %v504
  %v515 = vadd.f32 %v488, %v509
  %v516 = vadd.f32 %v489, %v510
  %v517 = vld [vmem:[#allocation2 + $0x48] sm:$0xff]
  %v518 = vld [vmem:[#allocation2 + $0x50] sm:$0xff]
  %v519 = vld [vmem:[#allocation2 + $0x58] sm:$0xff]
  %520 = vset.pattern.permute.xlu0 22
  %521 = vperm.xlu0 %520, %v58
  %v522 = vpop.permute.xlu0 %521
  %v524 = vmul.f32 %v522, %v517
  %v525 = vmul.f32 %v522, %v518
  %v526 = vmul.f32 %v522, %v519
  %530 = vrot.lane.b32.xlu0 %v524, 112
  %v531 = vpop.permute.xlu0 %530
  %532 = vrot.lane.b32.xlu0 %v525, 112
  %v533 = vpop.permute.xlu0 %532
  %534 = vrot.lane.b32.xlu0 %v526, 112
  %v535 = vpop.permute.xlu0 %534
  %v536 = vsel %vm306, %v531, %v533
  %v537 = vsel %vm306, %v533, %v535
  %v541 = vadd.f32 %v514, %v531
  %v542 = vadd.f32 %v515, %v536
  %v543 = vadd.f32 %v516, %v537
  %v544 = vld [vmem:[#allocation2 + $0x68] sm:$0xff]
  %v545 = vld [vmem:[#allocation2 + $0x70] sm:$0xff]
  %v546 = vld [vmem:[#allocation2 + $0x78] sm:$0xff]
  %547 = vset.pattern.permute.xlu0 23
  %548 = vperm.xlu0 %547, %v58
  %v549 = vpop.permute.xlu0 %548
  %v551 = vmul.f32 %v549, %v544
  %v552 = vmul.f32 %v549, %v545
  %v553 = vmul.f32 %v549, %v546
  %557 = vrot.lane.b32.xlu0 %v551, 112
  %v558 = vpop.permute.xlu0 %557
  %559 = vrot.lane.b32.xlu0 %v552, 112
  %v560 = vpop.permute.xlu0 %559
  %561 = vrot.lane.b32.xlu0 %v553, 112
  %v562 = vpop.permute.xlu0 %561
  %v563 = vsel %vm306, %v558, %v560
  %v564 = vsel %vm306, %v560, %v562
  %v568 = vadd.f32 %v541, %v558
  %v569 = vadd.f32 %v542, %v563
  %v570 = vadd.f32 %v543, %v564
  %571 = vset.pattern.permute.xlu0 24
  %572 = vperm.xlu0 %571, %v58
  %v573 = vpop.permute.xlu0 %572
  %v575 = vmul.f32 %v573, %v463
  %v576 = vmul.f32 %v573, %v464
  %v577 = vmul.f32 %v573, %v465
  %581 = vrot.lane.b32.xlu0 %v575, 96
  %v582 = vpop.permute.xlu0 %581
  %583 = vrot.lane.b32.xlu0 %v576, 96
  %v584 = vpop.permute.xlu0 %583
  %585 = vrot.lane.b32.xlu0 %v577, 96
  %v586 = vpop.permute.xlu0 %585
  %vm587 = vcmask 785408
  %v588 = vsel %vm587, %v582, %v584
  %v589 = vsel %vm587, %v584, %v586
  %v593 = vadd.f32 %v384, %v582
  %v594 = vadd.f32 %v385, %v588
  %v595 = vadd.f32 %v386, %v589
  %596 = vset.pattern.permute.xlu0 25
  %597 = vperm.xlu0 %596, %v58
  %v598 = vpop.permute.xlu0 %597
  %v600 = vmul.f32 %v598, %v490
  %v601 = vmul.f32 %v598, %v491
  %v602 = vmul.f32 %v598, %v492
  %606 = vrot.lane.b32.xlu0 %v600, 96
  %v607 = vpop.permute.xlu0 %606
  %608 = vrot.lane.b32.xlu0 %v601, 96
  %v609 = vpop.permute.xlu0 %608
  %610 = vrot.lane.b32.xlu0 %v602, 96
  %v611 = vpop.permute.xlu0 %610
  %v612 = vsel %vm587, %v607, %v609
  %v613 = vsel %vm587, %v609, %v611
  %v617 = vadd.f32 %v593, %v607
  %v618 = vadd.f32 %v594, %v612
  %v619 = vadd.f32 %v595, %v613
  %620 = vset.pattern.permute.xlu0 26
  %621 = vperm.xlu0 %620, %v58
  %v622 = vpop.permute.xlu0 %621
  %v624 = vmul.f32 %v622, %v517
  %v625 = vmul.f32 %v622, %v518
  %v626 = vmul.f32 %v622, %v519
  %630 = vrot.lane.b32.xlu0 %v624, 96
  %v631 = vpop.permute.xlu0 %630
  %632 = vrot.lane.b32.xlu0 %v625, 96
  %v633 = vpop.permute.xlu0 %632
  %634 = vrot.lane.b32.xlu0 %v626, 96
  %v635 = vpop.permute.xlu0 %634
  %v636 = vsel %vm587, %v631, %v633
  %v637 = vsel %vm587, %v633, %v635
  %v641 = vadd.f32 %v617, %v631
  %v642 = vadd.f32 %v618, %v636
  %v643 = vadd.f32 %v619, %v637
  %644 = vset.pattern.permute.xlu0 27
  %645 = vperm.xlu0 %644, %v58
  %v646 = vpop.permute.xlu0 %645
  %v648 = vmul.f32 %v646, %v544
  %v649 = vmul.f32 %v646, %v545
  %v650 = vmul.f32 %v646, %v546
  %654 = vrot.lane.b32.xlu0 %v648, 96
  %v655 = vpop.permute.xlu0 %654
  %656 = vrot.lane.b32.xlu0 %v649, 96
  %v657 = vpop.permute.xlu0 %656
  %658 = vrot.lane.b32.xlu0 %v650, 96
  %v659 = vpop.permute.xlu0 %658
  %v660 = vsel %vm587, %v655, %v657
  %v661 = vsel %vm587, %v657, %v659
  %v665 = vadd.f32 %v641, %v655
  %v666 = vadd.f32 %v642, %v660
  %v667 = vadd.f32 %v643, %v661
  %668 = vset.pattern.permute.xlu0 28
  %669 = vperm.xlu0 %668, %v58
  %v670 = vpop.permute.xlu0 %669
  %v672 = vmul.f32 %v670, %v463
  %v673 = vmul.f32 %v670, %v464
  %v674 = vmul.f32 %v670, %v465
  %678 = vrot.lane.b32.xlu0 %v672, 96
  %v679 = vpop.permute.xlu0 %678
  %680 = vrot.lane.b32.xlu0 %v673, 96
  %v681 = vpop.permute.xlu0 %680
  %682 = vrot.lane.b32.xlu0 %v674, 96
  %v683 = vpop.permute.xlu0 %682
  %v684 = vsel %vm587, %v679, %v681
  %v685 = vsel %vm587, %v681, %v683
  %v689 = vadd.f32 %v460, %v679
  %v690 = vadd.f32 %v461, %v684
  %v691 = vadd.f32 %v462, %v685
  %692 = vset.pattern.permute.xlu0 29
  %693 = vperm.xlu0 %692, %v58
  %v694 = vpop.permute.xlu0 %693
  %v696 = vmul.f32 %v694, %v490
  %v697 = vmul.f32 %v694, %v491
  %v698 = vmul.f32 %v694, %v492
  %702 = vrot.lane.b32.xlu0 %v696, 96
  %v703 = vpop.permute.xlu0 %702
  %704 = vrot.lane.b32.xlu0 %v697, 96
  %v705 = vpop.permute.xlu0 %704
  %706 = vrot.lane.b32.xlu0 %v698, 96
  %v707 = vpop.permute.xlu0 %706
  %v708 = vsel %vm587, %v703, %v705
  %v709 = vsel %vm587, %v705, %v707
  %v713 = vadd.f32 %v689, %v703
  %v714 = vadd.f32 %v690, %v708
  %v715 = vadd.f32 %v691, %v709
  %716 = vset.pattern.permute.xlu0 30
  %717 = vperm.xlu0 %716, %v58
  %v718 = vpop.permute.xlu0 %717
  %v720 = vmul.f32 %v718, %v517
  %v721 = vmul.f32 %v718, %v518
  %v722 = vmul.f32 %v718, %v519
  %726 = vrot.lane.b32.xlu0 %v720, 96
  %v727 = vpop.permute.xlu0 %726
  %728 = vrot.lane.b32.xlu0 %v721, 96
  %v729 = vpop.permute.xlu0 %728
  %730 = vrot.lane.b32.xlu0 %v722, 96
  %v731 = vpop.permute.xlu0 %730
  %v732 = vsel %vm587, %v727, %v729
  %v733 = vsel %vm587, %v729, %v731
  %v737 = vadd.f32 %v713, %v727
  %v738 = vadd.f32 %v714, %v732
  %v739 = vadd.f32 %v715, %v733
  %740 = vset.pattern.permute.xlu0 31
  %741 = vperm.xlu0 %740, %v58
  %v742 = vpop.permute.xlu0 %741
  %v744 = vmul.f32 %v742, %v544
  %v745 = vmul.f32 %v742, %v545
  %v746 = vmul.f32 %v742, %v546
  %750 = vrot.lane.b32.xlu0 %v744, 96
  %v751 = vpop.permute.xlu0 %750
  %752 = vrot.lane.b32.xlu0 %v745, 96
  %v753 = vpop.permute.xlu0 %752
  %754 = vrot.lane.b32.xlu0 %v746, 96
  %v755 = vpop.permute.xlu0 %754
  %v756 = vsel %vm587, %v751, %v753
  %v757 = vsel %vm587, %v753, %v755
  %v761 = vadd.f32 %v737, %v751
  %v762 = vadd.f32 %v738, %v756
  %v763 = vadd.f32 %v739, %v757
  %764 = vset.pattern.permute.xlu0 32
  %765 = vperm.xlu0 %764, %v58
  %v766 = vpop.permute.xlu0 %765
  %v768 = vmul.f32 %v766, %v463
  %v769 = vmul.f32 %v766, %v464
  %v770 = vmul.f32 %v766, %v465
  %774 = vrot.lane.b32.xlu0 %v768, 96
  %v775 = vpop.permute.xlu0 %774
  %776 = vrot.lane.b32.xlu0 %v769, 96
  %v777 = vpop.permute.xlu0 %776
  %778 = vrot.lane.b32.xlu0 %v770, 96
  %v779 = vpop.permute.xlu0 %778
  %v780 = vsel %vm587, %v775, %v777
  %v781 = vsel %vm587, %v777, %v779
  %v785 = vadd.f32 %v568, %v775
  %v786 = vadd.f32 %v569, %v780
  %v787 = vadd.f32 %v570, %v781
  %788 = vset.pattern.permute.xlu0 33
  %789 = vperm.xlu0 %788, %v58
  %v790 = vpop.permute.xlu0 %789
  %v792 = vmul.f32 %v790, %v490
  %v793 = vmul.f32 %v790, %v491
  %v794 = vmul.f32 %v790, %v492
  %798 = vrot.lane.b32.xlu0 %v792, 96
  %v799 = vpop.permute.xlu0 %798
  %800 = vrot.lane.b32.xlu0 %v793, 96
  %v801 = vpop.permute.xlu0 %800
  %802 = vrot.lane.b32.xlu0 %v794, 96
  %v803 = vpop.permute.xlu0 %802
  %v804 = vsel %vm587, %v799, %v801
  %v805 = vsel %vm587, %v801, %v803
  %v809 = vadd.f32 %v785, %v799
  %v810 = vadd.f32 %v786, %v804
  %v811 = vadd.f32 %v787, %v805
  %812 = vset.pattern.permute.xlu0 34
  %813 = vperm.xlu0 %812, %v58
  %v814 = vpop.permute.xlu0 %813
  %v816 = vmul.f32 %v814, %v517
  %v817 = vmul.f32 %v814, %v518
  %v818 = vmul.f32 %v814, %v519
  %822 = vrot.lane.b32.xlu0 %v816, 96
  %v823 = vpop.permute.xlu0 %822
  %824 = vrot.lane.b32.xlu0 %v817, 96
  %v825 = vpop.permute.xlu0 %824
  %826 = vrot.lane.b32.xlu0 %v818, 96
  %v827 = vpop.permute.xlu0 %826
  %v828 = vsel %vm587, %v823, %v825
  %v829 = vsel %vm587, %v825, %v827
  %v833 = vadd.f32 %v809, %v823
  %v834 = vadd.f32 %v810, %v828
  %v835 = vadd.f32 %v811, %v829
  %836 = vset.pattern.permute.xlu0 35
  %837 = vperm.xlu0 %836, %v58
  %v838 = vpop.permute.xlu0 %837
  %v840 = vmul.f32 %v838, %v544
  %v841 = vmul.f32 %v838, %v545
  %v842 = vmul.f32 %v838, %v546
  %846 = vrot.lane.b32.xlu0 %v840, 96
  %v847 = vpop.permute.xlu0 %846
  %848 = vrot.lane.b32.xlu0 %v841, 96
  %v849 = vpop.permute.xlu0 %848
  %850 = vrot.lane.b32.xlu0 %v842, 96
  %v851 = vpop.permute.xlu0 %850
  %v852 = vsel %vm587, %v847, %v849
  %v853 = vsel %vm587, %v849, %v851
  %v857 = vadd.f32 %v833, %v847
  %v858 = vadd.f32 %v834, %v852
  %v859 = vadd.f32 %v835, %v853
  %862 = vrot.lane.b32.xlu0 %v48, 111
  %v863 = vpop.permute.xlu0 %862
  %864 = vrot.lane.b32.xlu0 %v49, 111
  %v865 = vpop.permute.xlu0 %864
  %vm866 = vcmask 908288
  %v867 = vsel %vm866, %v863, %v865
  %v871 = vmul.f32 %v665, %v863
  %v872 = vmul.f32 %v666, %v867
  %v873 = vmul.f32 %v667, %v865
  %877 = vrot.lane.b32.xlu0 %v871, 1
  %v878 = vpop.permute.xlu0 %877
  %879 = vrot.lane.b32.xlu0 %v872, 1
  %v880 = vpop.permute.xlu0 %879
  %881 = vrot.lane.b32.xlu0 %v873, 1
  %v882 = vpop.permute.xlu0 %881
  %vm883 = vcmask 7168
  %v884 = vsel %vm883, %v878, %v880
  %v885 = vsel %vm883, %v880, %v882
  %v889 = vadd.f32 %v761, %v878
  %v890 = vadd.f32 %v762, %v884
  %v891 = vadd.f32 %v763, %v885
  %894 = vrot.lane.b32.xlu0 %v54, 113
  %v895 = vpop.permute.xlu0 %894
  %896 = vrot.lane.b32.xlu0 %v55, 113
  %v897 = vpop.permute.xlu0 %896
  %vm898 = vcmask 924672
  %v899 = vsel %vm898, %v895, %v897
  %v903 = vmul.f32 %v857, %v895
  %v904 = vmul.f32 %v858, %v899
  %v905 = vmul.f32 %v859, %v897
  %909 = vrot.lane.b32.xlu0 %v903, 127
  %v910 = vpop.permute.xlu0 %909
  %911 = vrot.lane.b32.xlu0 %v904, 127
  %v912 = vpop.permute.xlu0 %911
  %913 = vrot.lane.b32.xlu0 %v905, 127
  %v914 = vpop.permute.xlu0 %913
  %vm915 = vcmask 1039360
  %v916 = vsel %vm915, %v910, %v912
  %v917 = vsel %vm915, %v912, %v914
  %v921 = vadd.f32 %v889, %v916
  %v922 = vadd.f32 %v890, %v917
  %v923 = vadd.f32 %v891, %v914
  %927 = vrot.lane.b32.xlu0 %v921, 16
  %v928 = vpop.permute.xlu0 %927
  %929 = vrot.lane.b32.xlu0 %v922, 16
  %v930 = vpop.permute.xlu0 %929
  %931 = vrot.lane.b32.xlu0 %v923, 16
  %v932 = vpop.permute.xlu0 %931
  %vm933 = vcmask 130048
  %v934 = vsel %vm933, %v928, %v930
  %v935 = vsel %vm933, %v930, %v932
  %v938 = vadd.f32 %v934, %v935
  %939 = vadd.xlane.f32.xlu0 %v938
  %v940 = vpop.xlane.xlu0 %939
  %v941 = vmul.f32 %v921, %v921
  %v942 = vmul.f32 %v922, %v922
  %v943 = vmul.f32 %v923, %v923
  %947 = vrot.lane.b32.xlu0 %v941, 16
  %v948 = vpop.permute.xlu0 %947
  %949 = vrot.lane.b32.xlu0 %v942, 16
  %v950 = vpop.permute.xlu0 %949
  %951 = vrot.lane.b32.xlu0 %v943, 16
  %v952 = vpop.permute.xlu0 %951
  %v953 = vsel %vm933, %v948, %v950
  %v954 = vsel %vm933, %v950, %v952
  %v957 = vadd.f32 %v953, %v954
  %958 = vadd.xlane.f32.xlu0 %v957
  %v959 = vpop.xlane.xlu0 %958
  %v960 = vmul.f32 %v940, 0.00390625
  %v961 = vmul.f32 %v959, 0.00390625
  %v962 = vmul.f32 %v960, %v960
  %v963 = vsub.f32 %v961, %v962
  %v964 = vadd.f32 %v963, 1e-05
  %v965 = vrsqrt.pop %v964
  %v966 = vmul.f32 %v60, %v965
  %968 = vset.pattern.permute.xlu0 0
  %969 = vperm.xlu0 %968, %v966
  %v970 = vpop.permute.xlu0 %969
  %v972 = vmul.f32 %v921, %v970
  %v973 = vmul.f32 %v922, %v970
  %v974 = vmul.f32 %v923, %v970
  %v975 = vmul.f32 %v960, %v966
  %977 = vrot.lane.b32.xlu0 %v975, 1
  %v978 = vpop.permute.xlu0 %977
  %v980 = vsub.f32 %v60, %v978
  %982 = vset.pattern.permute.xlu0 1
  %983 = vperm.xlu0 %982, %v980
  %v984 = vpop.permute.xlu0 %983
  %v986 = vadd.f32 %v972, %v984
  %v987 = vadd.f32 %v973, %v984
  %v988 = vadd.f32 %v974, %v984
  %v989 = vmax.f32 %v986, 0.0
  %v990 = vmax.f32 %v987, 0.0
  %v991 = vmax.f32 %v988, 0.0
  %v992 = vlaneseq
  %v993 = vshrl.u32 %v992, 7
  %v994 = vsub.s32 0, %v993
  %v995 = vrot.slane %v989, %v994
  %v996 = vlaneseq
  %v997 = vshrl.u32 %v996, 7
  %v998 = vsub.s32 0, %v997
  %v999 = vrot.slane %v990, %v998
  %v1000 = vlaneseq
  %v1001 = vshrl.u32 %v1000, 7
  %v1002 = vsub.s32 0, %v1001
  %v1003 = vrot.slane %v991, %v1002
  %1007 = vrot.lane.b32.xlu0 %v995, 16
  %v1008 = vpop.permute.xlu0 %1007
  %1009 = vrot.lane.b32.xlu0 %v999, 16
  %v1010 = vpop.permute.xlu0 %1009
  %1011 = vrot.lane.b32.xlu0 %v1003, 16
  %v1012 = vpop.permute.xlu0 %1011
  %v1013 = vsel %vm933, %v1008, %v1010
  %v1014 = vsel %vm933, %v1010, %v1012
  %1017 = vst [vmem:[#allocation2 + $0x8] sm:$0xf] %v1013
  %1018 = vst [vmem:[#allocation2 + $0x10] sm:$0xf] %v1014
  %v1019 = vlaneseq
  %v1020 = vshrl.u32 %v1019, 7
  %v1021 = vsub.s32 4, %v1020
  %v1022 = vrot.slane %v989, %v1021
  %v1023 = vlaneseq
  %v1024 = vshrl.u32 %v1023, 7
  %v1025 = vsub.s32 4, %v1024
  %v1026 = vrot.slane %v990, %v1025
  %v1027 = vlaneseq
  %v1028 = vshrl.u32 %v1027, 7
  %v1029 = vsub.s32 4, %v1028
  %v1030 = vrot.slane %v991, %v1029
  %1034 = vrot.lane.b32.xlu0 %v1022, 16
  %v1035 = vpop.permute.xlu0 %1034
  %1036 = vrot.lane.b32.xlu0 %v1026, 16
  %v1037 = vpop.permute.xlu0 %1036
  %1038 = vrot.lane.b32.xlu0 %v1030, 16
  %v1039 = vpop.permute.xlu0 %1038
  %v1040 = vsel %vm933, %v1035, %v1037
  %v1041 = vsel %vm933, %v1037, %v1039
  %1044 = vst [vmem:[#allocation2 + $0x8] sm:$0xf0] %v1040
  %1045 = vst [vmem:[#allocation2 + $0x10] sm:$0xf0] %v1041
  %v1046 = vlaneseq
  %v1047 = vshrl.u32 %v1046, 7
  %v1048 = vsub.s32 1, %v1047
  %v1049 = vrot.slane %v989, %v1048
  %v1050 = vlaneseq
  %v1051 = vshrl.u32 %v1050, 7
  %v1052 = vsub.s32 1, %v1051
  %v1053 = vrot.slane %v990, %v1052
  %v1054 = vlaneseq
  %v1055 = vshrl.u32 %v1054, 7
  %v1056 = vsub.s32 1, %v1055
  %v1057 = vrot.slane %v991, %v1056
  %1061 = vrot.lane.b32.xlu0 %v1049, 16
  %v1062 = vpop.permute.xlu0 %1061
  %1063 = vrot.lane.b32.xlu0 %v1053, 16
  %v1064 = vpop.permute.xlu0 %1063
  %1065 = vrot.lane.b32.xlu0 %v1057, 16
  %v1066 = vpop.permute.xlu0 %1065
  %v1067 = vsel %vm933, %v1062, %v1064
  %v1068 = vsel %vm933, %v1064, %v1066
  %1071 = vst [vmem:[#allocation2 + $0x28] sm:$0xf] %v1067
  %1072 = vst [vmem:[#allocation2 + $0x30] sm:$0xf] %v1068
  %v1073 = vlaneseq
  %v1074 = vshrl.u32 %v1073, 7
  %v1075 = vsub.s32 5, %v1074
  %v1076 = vrot.slane %v989, %v1075
  %v1077 = vlaneseq
  %v1078 = vshrl.u32 %v1077, 7
  %v1079 = vsub.s32 5, %v1078
  %v1080 = vrot.slane %v990, %v1079
  %v1081 = vlaneseq
  %v1082 = vshrl.u32 %v1081, 7
  %v1083 = vsub.s32 5, %v1082
  %v1084 = vrot.slane %v991, %v1083
  %1088 = vrot.lane.b32.xlu0 %v1076, 16
  %v1089 = vpop.permute.xlu0 %1088
  %1090 = vrot.lane.b32.xlu0 %v1080, 16
  %v1091 = vpop.permute.xlu0 %1090
  %1092 = vrot.lane.b32.xlu0 %v1084, 16
  %v1093 = vpop.permute.xlu0 %1092
  %v1094 = vsel %vm933, %v1089, %v1091
  %v1095 = vsel %vm933, %v1091, %v1093
  %1098 = vst [vmem:[#allocation2 + $0x28] sm:$0xf0] %v1094
  %1099 = vst [vmem:[#allocation2 + $0x30] sm:$0xf0] %v1095
  %v1100 = vlaneseq
  %v1101 = vshrl.u32 %v1100, 7
  %v1102 = vsub.s32 2, %v1101
  %v1103 = vrot.slane %v989, %v1102
  %v1104 = vlaneseq
  %v1105 = vshrl.u32 %v1104, 7
  %v1106 = vsub.s32 2, %v1105
  %v1107 = vrot.slane %v990, %v1106
  %v1108 = vlaneseq
  %v1109 = vshrl.u32 %v1108, 7
  %v1110 = vsub.s32 2, %v1109
  %v1111 = vrot.slane %v991, %v1110
  %1115 = vrot.lane.b32.xlu0 %v1103, 16
  %v1116 = vpop.permute.xlu0 %1115
  %1117 = vrot.lane.b32.xlu0 %v1107, 16
  %v1118 = vpop.permute.xlu0 %1117
  %1119 = vrot.lane.b32.xlu0 %v1111, 16
  %v1120 = vpop.permute.xlu0 %1119
  %v1121 = vsel %vm933, %v1116, %v1118
  %v1122 = vsel %vm933, %v1118, %v1120
  %1125 = vst [vmem:[#allocation2 + $0x48] sm:$0xf] %v1121
  %1126 = vst [vmem:[#allocation2 + $0x50] sm:$0xf] %v1122
  %v1127 = vlaneseq
  %v1128 = vshrl.u32 %v1127, 7
  %v1129 = vsub.s32 6, %v1128
  %v1130 = vrot.slane %v989, %v1129
  %v1131 = vlaneseq
  %v1132 = vshrl.u32 %v1131, 7
  %v1133 = vsub.s32 6, %v1132
  %v1134 = vrot.slane %v990, %v1133
  %v1135 = vlaneseq
  %v1136 = vshrl.u32 %v1135, 7
  %v1137 = vsub.s32 6, %v1136
  %v1138 = vrot.slane %v991, %v1137
  %1142 = vrot.lane.b32.xlu0 %v1130, 16
  %v1143 = vpop.permute.xlu0 %1142
  %1144 = vrot.lane.b32.xlu0 %v1134, 16
  %v1145 = vpop.permute.xlu0 %1144
  %1146 = vrot.lane.b32.xlu0 %v1138, 16
  %v1147 = vpop.permute.xlu0 %1146
  %v1148 = vsel %vm933, %v1143, %v1145
  %v1149 = vsel %vm933, %v1145, %v1147
  %1152 = vst [vmem:[#allocation2 + $0x48] sm:$0xf0] %v1148
  %1153 = vst [vmem:[#allocation2 + $0x50] sm:$0xf0] %v1149
  %v1154 = vlaneseq
  %v1155 = vshrl.u32 %v1154, 7
  %v1156 = vsub.s32 3, %v1155
  %v1157 = vrot.slane %v989, %v1156
  %v1158 = vlaneseq
  %v1159 = vshrl.u32 %v1158, 7
  %v1160 = vsub.s32 3, %v1159
  %v1161 = vrot.slane %v990, %v1160
  %v1162 = vlaneseq
  %v1163 = vshrl.u32 %v1162, 7
  %v1164 = vsub.s32 3, %v1163
  %v1165 = vrot.slane %v991, %v1164
  %1169 = vrot.lane.b32.xlu0 %v1157, 16
  %v1170 = vpop.permute.xlu0 %1169
  %1171 = vrot.lane.b32.xlu0 %v1161, 16
  %v1172 = vpop.permute.xlu0 %1171
  %1173 = vrot.lane.b32.xlu0 %v1165, 16
  %v1174 = vpop.permute.xlu0 %1173
  %v1175 = vsel %vm933, %v1170, %v1172
  %v1176 = vsel %vm933, %v1172, %v1174
  %1179 = vst [vmem:[#allocation2 + $0x68] sm:$0xf] %v1175
  %1180 = vst [vmem:[#allocation2 + $0x70] sm:$0xf] %v1176
  %v1181 = vlaneseq
  %v1182 = vshrl.u32 %v1181, 7
  %v1183 = vsub.s32 7, %v1182
  %v1184 = vrot.slane %v989, %v1183
  %v1185 = vlaneseq
  %v1186 = vshrl.u32 %v1185, 7
  %v1187 = vsub.s32 7, %v1186
  %v1188 = vrot.slane %v990, %v1187
  %v1189 = vlaneseq
  %v1190 = vshrl.u32 %v1189, 7
  %v1191 = vsub.s32 7, %v1190
  %v1192 = vrot.slane %v991, %v1191
  %1196 = vrot.lane.b32.xlu0 %v1184, 16
  %v1197 = vpop.permute.xlu0 %1196
  %1198 = vrot.lane.b32.xlu0 %v1188, 16
  %v1199 = vpop.permute.xlu0 %1198
  %1200 = vrot.lane.b32.xlu0 %v1192, 16
  %v1201 = vpop.permute.xlu0 %1200
  %v1202 = vsel %vm933, %v1197, %v1199
  %v1203 = vsel %vm933, %v1199, %v1201
  %1206 = vst [vmem:[#allocation2 + $0x68] sm:$0xf0] %v1202
  %1207 = vst [vmem:[#allocation2 + $0x70] sm:$0xf0] %v1203
  %v1208 = vld [vmem:[#allocation2] sm:$0xff]
  %v1209 = vld [vmem:[#allocation2 + $0x8] sm:$0xff]
  %v1210 = vld [vmem:[#allocation2 + $0x10] sm:$0xff]
  %1212 = vset.pattern.permute.xlu0 0
  %1213 = vperm.xlu0 %1212, %v59
  %v1214 = vpop.permute.xlu0 %1213
  %v1216 = vmul.f32 %v1214, %v1208
  %v1217 = vmul.f32 %v1214, %v1209
  %v1218 = vmul.f32 %v1214, %v1210
  %v1219 = vadd.f32 %v1216, 0.0
  %v1220 = vadd.f32 %v1217, 0.0
  %v1221 = vadd.f32 %v1218, 0.0
  %v1222 = vld [vmem:[#allocation2 + $0x20] sm:$0xff]
  %v1223 = vld [vmem:[#allocation2 + $0x28] sm:$0xff]
  %v1224 = vld [vmem:[#allocation2 + $0x30] sm:$0xff]
  %1225 = vset.pattern.permute.xlu0 1
  %1226 = vperm.xlu0 %1225, %v59
  %v1227 = vpop.permute.xlu0 %1226
  %v1229 = vmul.f32 %v1227, %v1222
  %v1230 = vmul.f32 %v1227, %v1223
  %v1231 = vmul.f32 %v1227, %v1224
  %v1232 = vadd.f32 %v1219, %v1229
  %v1233 = vadd.f32 %v1220, %v1230
  %v1234 = vadd.f32 %v1221, %v1231
  %v1235 = vld [vmem:[#allocation2 + $0x40] sm:$0xff]
  %v1236 = vld [vmem:[#allocation2 + $0x48] sm:$0xff]
  %v1237 = vld [vmem:[#allocation2 + $0x50] sm:$0xff]
  %1238 = vset.pattern.permute.xlu0 2
  %1239 = vperm.xlu0 %1238, %v59
  %v1240 = vpop.permute.xlu0 %1239
  %v1242 = vmul.f32 %v1240, %v1235
  %v1243 = vmul.f32 %v1240, %v1236
  %v1244 = vmul.f32 %v1240, %v1237
  %v1245 = vadd.f32 %v1232, %v1242
  %v1246 = vadd.f32 %v1233, %v1243
  %v1247 = vadd.f32 %v1234, %v1244
  %v1248 = vld [vmem:[#allocation2 + $0x60] sm:$0xff]
  %v1249 = vld [vmem:[#allocation2 + $0x68] sm:$0xff]
  %v1250 = vld [vmem:[#allocation2 + $0x70] sm:$0xff]
  %1251 = vset.pattern.permute.xlu0 3
  %1252 = vperm.xlu0 %1251, %v59
  %v1253 = vpop.permute.xlu0 %1252
  %v1255 = vmul.f32 %v1253, %v1248
  %v1256 = vmul.f32 %v1253, %v1249
  %v1257 = vmul.f32 %v1253, %v1250
  %v1258 = vadd.f32 %v1245, %v1255
  %v1259 = vadd.f32 %v1246, %v1256
  %v1260 = vadd.f32 %v1247, %v1257
  %1261 = vset.pattern.permute.xlu0 4
  %1262 = vperm.xlu0 %1261, %v59
  %v1263 = vpop.permute.xlu0 %1262
  %v1265 = vmul.f32 %v1263, %v1208
  %v1266 = vmul.f32 %v1263, %v1209
  %v1267 = vmul.f32 %v1263, %v1210
  %v1268 = vadd.f32 %v1265, 0.0
  %v1269 = vadd.f32 %v1266, 0.0
  %v1270 = vadd.f32 %v1267, 0.0
  %1271 = vset.pattern.permute.xlu0 5
  %1272 = vperm.xlu0 %1271, %v59
  %v1273 = vpop.permute.xlu0 %1272
  %v1275 = vmul.f32 %v1273, %v1222
  %v1276 = vmul.f32 %v1273, %v1223
  %v1277 = vmul.f32 %v1273, %v1224
  %v1278 = vadd.f32 %v1268, %v1275
  %v1279 = vadd.f32 %v1269, %v1276
  %v1280 = vadd.f32 %v1270, %v1277
  %1281 = vset.pattern.permute.xlu0 6
  %1282 = vperm.xlu0 %1281, %v59
  %v1283 = vpop.permute.xlu0 %1282
  %v1285 = vmul.f32 %v1283, %v1235
  %v1286 = vmul.f32 %v1283, %v1236
  %v1287 = vmul.f32 %v1283, %v1237
  %v1288 = vadd.f32 %v1278, %v1285
  %v1289 = vadd.f32 %v1279, %v1286
  %v1290 = vadd.f32 %v1280, %v1287
  %1291 = vset.pattern.permute.xlu0 7
  %1292 = vperm.xlu0 %1291, %v59
  %v1293 = vpop.permute.xlu0 %1292
  %v1295 = vmul.f32 %v1293, %v1248
  %v1296 = vmul.f32 %v1293, %v1249
  %v1297 = vmul.f32 %v1293, %v1250
  %v1298 = vadd.f32 %v1288, %v1295
  %v1299 = vadd.f32 %v1289, %v1296
  %v1300 = vadd.f32 %v1290, %v1297
  %1301 = vset.pattern.permute.xlu0 8
  %1302 = vperm.xlu0 %1301, %v59
  %v1303 = vpop.permute.xlu0 %1302
  %v1305 = vmul.f32 %v1303, %v1208
  %v1306 = vmul.f32 %v1303, %v1209
  %v1307 = vmul.f32 %v1303, %v1210
  %v1308 = vadd.f32 %v1305, 0.0
  %v1309 = vadd.f32 %v1306, 0.0
  %v1310 = vadd.f32 %v1307, 0.0
  %1311 = vset.pattern.permute.xlu0 9
  %1312 = vperm.xlu0 %1311, %v59
  %v1313 = vpop.permute.xlu0 %1312
  %v1315 = vmul.f32 %v1313, %v1222
  %v1316 = vmul.f32 %v1313, %v1223
  %v1317 = vmul.f32 %v1313, %v1224
  %v1318 = vadd.f32 %v1308, %v1315
  %v1319 = vadd.f32 %v1309, %v1316
  %v1320 = vadd.f32 %v1310, %v1317
  %1321 = vset.pattern.permute.xlu0 10
  %1322 = vperm.xlu0 %1321, %v59
  %v1323 = vpop.permute.xlu0 %1322
  %v1325 = vmul.f32 %v1323, %v1235
  %v1326 = vmul.f32 %v1323, %v1236
  %v1327 = vmul.f32 %v1323, %v1237
  %v1328 = vadd.f32 %v1318, %v1325
  %v1329 = vadd.f32 %v1319, %v1326
  %v1330 = vadd.f32 %v1320, %v1327
  %1331 = vset.pattern.permute.xlu0 11
  %1332 = vperm.xlu0 %1331, %v59
  %v1333 = vpop.permute.xlu0 %1332
  %v1335 = vmul.f32 %v1333, %v1248
  %v1336 = vmul.f32 %v1333, %v1249
  %v1337 = vmul.f32 %v1333, %v1250
  %v1338 = vadd.f32 %v1328, %v1335
  %v1339 = vadd.f32 %v1329, %v1336
  %v1340 = vadd.f32 %v1330, %v1337
  %1341 = vset.pattern.permute.xlu0 12
  %1342 = vperm.xlu0 %1341, %v59
  %v1343 = vpop.permute.xlu0 %1342
  %v1345 = vmul.f32 %v1343, %v1208
  %v1346 = vmul.f32 %v1343, %v1209
  %v1347 = vmul.f32 %v1343, %v1210
  %1351 = vrot.lane.b32.xlu0 %v1345, 112
  %v1352 = vpop.permute.xlu0 %1351
  %1353 = vrot.lane.b32.xlu0 %v1346, 112
  %v1354 = vpop.permute.xlu0 %1353
  %1355 = vrot.lane.b32.xlu0 %v1347, 112
  %v1356 = vpop.permute.xlu0 %1355
  %v1357 = vsel %vm306, %v1352, %v1354
  %v1358 = vsel %vm306, %v1354, %v1356
  %v1362 = vadd.f32 %v1258, %v1357
  %v1363 = vadd.f32 %v1259, %v1358
  %v1364 = vadd.f32 %v1260, %v1356
  %1365 = vset.pattern.permute.xlu0 13
  %1366 = vperm.xlu0 %1365, %v59
  %v1367 = vpop.permute.xlu0 %1366
  %v1369 = vmul.f32 %v1367, %v1222
  %v1370 = vmul.f32 %v1367, %v1223
  %v1371 = vmul.f32 %v1367, %v1224
  %1375 = vrot.lane.b32.xlu0 %v1369, 112
  %v1376 = vpop.permute.xlu0 %1375
  %1377 = vrot.lane.b32.xlu0 %v1370, 112
  %v1378 = vpop.permute.xlu0 %1377
  %1379 = vrot.lane.b32.xlu0 %v1371, 112
  %v1380 = vpop.permute.xlu0 %1379
  %v1381 = vsel %vm306, %v1376, %v1378
  %v1382 = vsel %vm306, %v1378, %v1380
  %v1386 = vadd.f32 %v1362, %v1381
  %v1387 = vadd.f32 %v1363, %v1382
  %v1388 = vadd.f32 %v1364, %v1380
  %1389 = vset.pattern.permute.xlu0 14
  %1390 = vperm.xlu0 %1389, %v59
  %v1391 = vpop.permute.xlu0 %1390
  %v1393 = vmul.f32 %v1391, %v1235
  %v1394 = vmul.f32 %v1391, %v1236
  %v1395 = vmul.f32 %v1391, %v1237
  %1399 = vrot.lane.b32.xlu0 %v1393, 112
  %v1400 = vpop.permute.xlu0 %1399
  %1401 = vrot.lane.b32.xlu0 %v1394, 112
  %v1402 = vpop.permute.xlu0 %1401
  %1403 = vrot.lane.b32.xlu0 %v1395, 112
  %v1404 = vpop.permute.xlu0 %1403
  %v1405 = vsel %vm306, %v1400, %v1402
  %v1406 = vsel %vm306, %v1402, %v1404
  %v1410 = vadd.f32 %v1386, %v1405
  %v1411 = vadd.f32 %v1387, %v1406
  %v1412 = vadd.f32 %v1388, %v1404
  %1413 = vset.pattern.permute.xlu0 15
  %1414 = vperm.xlu0 %1413, %v59
  %v1415 = vpop.permute.xlu0 %1414
  %v1417 = vmul.f32 %v1415, %v1248
  %v1418 = vmul.f32 %v1415, %v1249
  %v1419 = vmul.f32 %v1415, %v1250
  %1423 = vrot.lane.b32.xlu0 %v1417, 112
  %v1424 = vpop.permute.xlu0 %1423
  %1425 = vrot.lane.b32.xlu0 %v1418, 112
  %v1426 = vpop.permute.xlu0 %1425
  %1427 = vrot.lane.b32.xlu0 %v1419, 112
  %v1428 = vpop.permute.xlu0 %1427
  %v1429 = vsel %vm306, %v1424, %v1426
  %v1430 = vsel %vm306, %v1426, %v1428
  %v1434 = vadd.f32 %v1410, %v1429
  %v1435 = vadd.f32 %v1411, %v1430
  %v1436 = vadd.f32 %v1412, %v1428
  %1437 = vset.pattern.permute.xlu0 16
  %1438 = vperm.xlu0 %1437, %v59
  %v1439 = vpop.permute.xlu0 %1438
  %v1441 = vmul.f32 %v1439, %v1209
  %v1442 = vmul.f32 %v1439, %v1210
  %1445 = vrot.lane.b32.xlu0 %v1441, 112
  %v1446 = vpop.permute.xlu0 %1445
  %1447 = vrot.lane.b32.xlu0 %v1442, 112
  %v1448 = vpop.permute.xlu0 %1447
  %v1449 = vsel %vm306, %v1446, %v1448
  %v1453 = vadd.f32 %v1298, %v1446
  %v1454 = vadd.f32 %v1299, %v1449
  %v1455 = vadd.f32 %v1300, %v1448
  %1456 = vset.pattern.permute.xlu0 17
  %1457 = vperm.xlu0 %1456, %v59
  %v1458 = vpop.permute.xlu0 %1457
  %v1460 = vmul.f32 %v1458, %v1223
  %v1461 = vmul.f32 %v1458, %v1224
  %1464 = vrot.lane.b32.xlu0 %v1460, 112
  %v1465 = vpop.permute.xlu0 %1464
  %1466 = vrot.lane.b32.xlu0 %v1461, 112
  %v1467 = vpop.permute.xlu0 %1466
  %v1468 = vsel %vm306, %v1465, %v1467
  %v1472 = vadd.f32 %v1453, %v1465
  %v1473 = vadd.f32 %v1454, %v1468
  %v1474 = vadd.f32 %v1455, %v1467
  %1475 = vset.pattern.permute.xlu0 18
  %1476 = vperm.xlu0 %1475, %v59
  %v1477 = vpop.permute.xlu0 %1476
  %v1479 = vmul.f32 %v1477, %v1236
  %v1480 = vmul.f32 %v1477, %v1237
  %1483 = vrot.lane.b32.xlu0 %v1479, 112
  %v1484 = vpop.permute.xlu0 %1483
  %1485 = vrot.lane.b32.xlu0 %v1480, 112
  %v1486 = vpop.permute.xlu0 %1485
  %v1487 = vsel %vm306, %v1484, %v1486
  %v1491 = vadd.f32 %v1472, %v1484
  %v1492 = vadd.f32 %v1473, %v1487
  %v1493 = vadd.f32 %v1474, %v1486
  %1494 = vset.pattern.permute.xlu0 19
  %1495 = vperm.xlu0 %1494, %v59
  %v1496 = vpop.permute.xlu0 %1495
  %v1498 = vmul.f32 %v1496, %v1249
  %v1499 = vmul.f32 %v1496, %v1250
  %1502 = vrot.lane.b32.xlu0 %v1498, 112
  %v1503 = vpop.permute.xlu0 %1502
  %1504 = vrot.lane.b32.xlu0 %v1499, 112
  %v1505 = vpop.permute.xlu0 %1504
  %v1506 = vsel %vm306, %v1503, %v1505
  %v1510 = vadd.f32 %v1491, %v1503
  %v1511 = vadd.f32 %v1492, %v1506
  %v1512 = vadd.f32 %v1493, %v1505
  %v1513 = vld [vmem:[#allocation2 + $0x8] sm:$0xff]
  %v1514 = vld [vmem:[#allocation2 + $0x10] sm:$0xff]
  %v1515 = vld [vmem:[#allocation2 + $0x18] sm:$0xff]
  %1516 = vset.pattern.permute.xlu0 20
  %1517 = vperm.xlu0 %1516, %v59
  %v1518 = vpop.permute.xlu0 %1517
  %v1520 = vmul.f32 %v1518, %v1513
  %v1521 = vmul.f32 %v1518, %v1514
  %v1522 = vmul.f32 %v1518, %v1515
  %1526 = vrot.lane.b32.xlu0 %v1520, 112
  %v1527 = vpop.permute.xlu0 %1526
  %1528 = vrot.lane.b32.xlu0 %v1521, 112
  %v1529 = vpop.permute.xlu0 %1528
  %1530 = vrot.lane.b32.xlu0 %v1522, 112
  %v1531 = vpop.permute.xlu0 %1530
  %v1532 = vsel %vm306, %v1527, %v1529
  %v1533 = vsel %vm306, %v1529, %v1531
  %v1537 = vadd.f32 %v1338, %v1527
  %v1538 = vadd.f32 %v1339, %v1532
  %v1539 = vadd.f32 %v1340, %v1533
  %v1540 = vld [vmem:[#allocation2 + $0x28] sm:$0xff]
  %v1541 = vld [vmem:[#allocation2 + $0x30] sm:$0xff]
  %v1542 = vld [vmem:[#allocation2 + $0x38] sm:$0xff]
  %1543 = vset.pattern.permute.xlu0 21
  %1544 = vperm.xlu0 %1543, %v59
  %v1545 = vpop.permute.xlu0 %1544
  %v1547 = vmul.f32 %v1545, %v1540
  %v1548 = vmul.f32 %v1545, %v1541
  %v1549 = vmul.f32 %v1545, %v1542
  %1553 = vrot.lane.b32.xlu0 %v1547, 112
  %v1554 = vpop.permute.xlu0 %1553
  %1555 = vrot.lane.b32.xlu0 %v1548, 112
  %v1556 = vpop.permute.xlu0 %1555
  %1557 = vrot.lane.b32.xlu0 %v1549, 112
  %v1558 = vpop.permute.xlu0 %1557
  %v1559 = vsel %vm306, %v1554, %v1556
  %v1560 = vsel %vm306, %v1556, %v1558
  %v1564 = vadd.f32 %v1537, %v1554
  %v1565 = vadd.f32 %v1538, %v1559
  %v1566 = vadd.f32 %v1539, %v1560
  %v1567 = vld [vmem:[#allocation2 + $0x48] sm:$0xff]
  %v1568 = vld [vmem:[#allocation2 + $0x50] sm:$0xff]
  %v1569 = vld [vmem:[#allocation2 + $0x58] sm:$0xff]
  %1570 = vset.pattern.permute.xlu0 22
  %1571 = vperm.xlu0 %1570, %v59
  %v1572 = vpop.permute.xlu0 %1571
  %v1574 = vmul.f32 %v1572, %v1567
  %v1575 = vmul.f32 %v1572, %v1568
  %v1576 = vmul.f32 %v1572, %v1569
  %1580 = vrot.lane.b32.xlu0 %v1574, 112
  %v1581 = vpop.permute.xlu0 %1580
  %1582 = vrot.lane.b32.xlu0 %v1575, 112
  %v1583 = vpop.permute.xlu0 %1582
  %1584 = vrot.lane.b32.xlu0 %v1576, 112
  %v1585 = vpop.permute.xlu0 %1584
  %v1586 = vsel %vm306, %v1581, %v1583
  %v1587 = vsel %vm306, %v1583, %v1585
  %v1591 = vadd.f32 %v1564, %v1581
  %v1592 = vadd.f32 %v1565, %v1586
  %v1593 = vadd.f32 %v1566, %v1587
  %v1594 = vld [vmem:[#allocation2 + $0x68] sm:$0xff]
  %v1595 = vld [vmem:[#allocation2 + $0x70] sm:$0xff]
  %v1596 = vld [vmem:[#allocation2 + $0x78] sm:$0xff]
  %1597 = vset.pattern.permute.xlu0 23
  %1598 = vperm.xlu0 %1597, %v59
  %v1599 = vpop.permute.xlu0 %1598
  %v1601 = vmul.f32 %v1599, %v1594
  %v1602 = vmul.f32 %v1599, %v1595
  %v1603 = vmul.f32 %v1599, %v1596
  %1607 = vrot.lane.b32.xlu0 %v1601, 112
  %v1608 = vpop.permute.xlu0 %1607
  %1609 = vrot.lane.b32.xlu0 %v1602, 112
  %v1610 = vpop.permute.xlu0 %1609
  %1611 = vrot.lane.b32.xlu0 %v1603, 112
  %v1612 = vpop.permute.xlu0 %1611
  %v1613 = vsel %vm306, %v1608, %v1610
  %v1614 = vsel %vm306, %v1610, %v1612
  %v1618 = vadd.f32 %v1591, %v1608
  %v1619 = vadd.f32 %v1592, %v1613
  %v1620 = vadd.f32 %v1593, %v1614
  %1621 = vset.pattern.permute.xlu0 24
  %1622 = vperm.xlu0 %1621, %v59
  %v1623 = vpop.permute.xlu0 %1622
  %v1625 = vmul.f32 %v1623, %v1513
  %v1626 = vmul.f32 %v1623, %v1514
  %v1627 = vmul.f32 %v1623, %v1515
  %1631 = vrot.lane.b32.xlu0 %v1625, 96
  %v1632 = vpop.permute.xlu0 %1631
  %1633 = vrot.lane.b32.xlu0 %v1626, 96
  %v1634 = vpop.permute.xlu0 %1633
  %1635 = vrot.lane.b32.xlu0 %v1627, 96
  %v1636 = vpop.permute.xlu0 %1635
  %v1637 = vsel %vm587, %v1632, %v1634
  %v1638 = vsel %vm587, %v1634, %v1636
  %v1642 = vadd.f32 %v1434, %v1632
  %v1643 = vadd.f32 %v1435, %v1637
  %v1644 = vadd.f32 %v1436, %v1638
  %1645 = vset.pattern.permute.xlu0 25
  %1646 = vperm.xlu0 %1645, %v59
  %v1647 = vpop.permute.xlu0 %1646
  %v1649 = vmul.f32 %v1647, %v1540
  %v1650 = vmul.f32 %v1647, %v1541
  %v1651 = vmul.f32 %v1647, %v1542
  %1655 = vrot.lane.b32.xlu0 %v1649, 96
  %v1656 = vpop.permute.xlu0 %1655
  %1657 = vrot.lane.b32.xlu0 %v1650, 96
  %v1658 = vpop.permute.xlu0 %1657
  %1659 = vrot.lane.b32.xlu0 %v1651, 96
  %v1660 = vpop.permute.xlu0 %1659
  %v1661 = vsel %vm587, %v1656, %v1658
  %v1662 = vsel %vm587, %v1658, %v1660
  %v1666 = vadd.f32 %v1642, %v1656
  %v1667 = vadd.f32 %v1643, %v1661
  %v1668 = vadd.f32 %v1644, %v1662
  %1669 = vset.pattern.permute.xlu0 26
  %1670 = vperm.xlu0 %1669, %v59
  %v1671 = vpop.permute.xlu0 %1670
  %v1673 = vmul.f32 %v1671, %v1567
  %v1674 = vmul.f32 %v1671, %v1568
  %v1675 = vmul.f32 %v1671, %v1569
  %1679 = vrot.lane.b32.xlu0 %v1673, 96
  %v1680 = vpop.permute.xlu0 %1679
  %1681 = vrot.lane.b32.xlu0 %v1674, 96
  %v1682 = vpop.permute.xlu0 %1681
  %1683 = vrot.lane.b32.xlu0 %v1675, 96
  %v1684 = vpop.permute.xlu0 %1683
  %v1685 = vsel %vm587, %v1680, %v1682
  %v1686 = vsel %vm587, %v1682, %v1684
  %v1690 = vadd.f32 %v1666, %v1680
  %v1691 = vadd.f32 %v1667, %v1685
  %v1692 = vadd.f32 %v1668, %v1686
  %1693 = vset.pattern.permute.xlu0 27
  %1694 = vperm.xlu0 %1693, %v59
  %v1695 = vpop.permute.xlu0 %1694
  %v1697 = vmul.f32 %v1695, %v1594
  %v1698 = vmul.f32 %v1695, %v1595
  %v1699 = vmul.f32 %v1695, %v1596
  %1703 = vrot.lane.b32.xlu0 %v1697, 96
  %v1704 = vpop.permute.xlu0 %1703
  %1705 = vrot.lane.b32.xlu0 %v1698, 96
  %v1706 = vpop.permute.xlu0 %1705
  %1707 = vrot.lane.b32.xlu0 %v1699, 96
  %v1708 = vpop.permute.xlu0 %1707
  %v1709 = vsel %vm587, %v1704, %v1706
  %v1710 = vsel %vm587, %v1706, %v1708
  %v1714 = vadd.f32 %v1690, %v1704
  %v1715 = vadd.f32 %v1691, %v1709
  %v1716 = vadd.f32 %v1692, %v1710
  %1717 = vset.pattern.permute.xlu0 28
  %1718 = vperm.xlu0 %1717, %v59
  %v1719 = vpop.permute.xlu0 %1718
  %v1721 = vmul.f32 %v1719, %v1513
  %v1722 = vmul.f32 %v1719, %v1514
  %v1723 = vmul.f32 %v1719, %v1515
  %1727 = vrot.lane.b32.xlu0 %v1721, 96
  %v1728 = vpop.permute.xlu0 %1727
  %1729 = vrot.lane.b32.xlu0 %v1722, 96
  %v1730 = vpop.permute.xlu0 %1729
  %1731 = vrot.lane.b32.xlu0 %v1723, 96
  %v1732 = vpop.permute.xlu0 %1731
  %v1733 = vsel %vm587, %v1728, %v1730
  %v1734 = vsel %vm587, %v1730, %v1732
  %v1738 = vadd.f32 %v1510, %v1728
  %v1739 = vadd.f32 %v1511, %v1733
  %v1740 = vadd.f32 %v1512, %v1734
  %1741 = vset.pattern.permute.xlu0 29
  %1742 = vperm.xlu0 %1741, %v59
  %v1743 = vpop.permute.xlu0 %1742
  %v1745 = vmul.f32 %v1743, %v1540
  %v1746 = vmul.f32 %v1743, %v1541
  %v1747 = vmul.f32 %v1743, %v1542
  %1751 = vrot.lane.b32.xlu0 %v1745, 96
  %v1752 = vpop.permute.xlu0 %1751
  %1753 = vrot.lane.b32.xlu0 %v1746, 96
  %v1754 = vpop.permute.xlu0 %1753
  %1755 = vrot.lane.b32.xlu0 %v1747, 96
  %v1756 = vpop.permute.xlu0 %1755
  %v1757 = vsel %vm587, %v1752, %v1754
  %v1758 = vsel %vm587, %v1754, %v1756
  %v1762 = vadd.f32 %v1738, %v1752
  %v1763 = vadd.f32 %v1739, %v1757
  %v1764 = vadd.f32 %v1740, %v1758
  %1765 = vset.pattern.permute.xlu0 30
  %1766 = vperm.xlu0 %1765, %v59
  %v1767 = vpop.permute.xlu0 %1766
  %v1769 = vmul.f32 %v1767, %v1567
  %v1770 = vmul.f32 %v1767, %v1568
  %v1771 = vmul.f32 %v1767, %v1569
  %1775 = vrot.lane.b32.xlu0 %v1769, 96
  %v1776 = vpop.permute.xlu0 %1775
  %1777 = vrot.lane.b32.xlu0 %v1770, 96
  %v1778 = vpop.permute.xlu0 %1777
  %1779 = vrot.lane.b32.xlu0 %v1771, 96
  %v1780 = vpop.permute.xlu0 %1779
  %v1781 = vsel %vm587, %v1776, %v1778
  %v1782 = vsel %vm587, %v1778, %v1780
  %v1786 = vadd.f32 %v1762, %v1776
  %v1787 = vadd.f32 %v1763, %v1781
  %v1788 = vadd.f32 %v1764, %v1782
  %1789 = vset.pattern.permute.xlu0 31
  %1790 = vperm.xlu0 %1789, %v59
  %v1791 = vpop.permute.xlu0 %1790
  %v1793 = vmul.f32 %v1791, %v1594
  %v1794 = vmul.f32 %v1791, %v1595
  %v1795 = vmul.f32 %v1791, %v1596
  %1799 = vrot.lane.b32.xlu0 %v1793, 96
  %v1800 = vpop.permute.xlu0 %1799
  %1801 = vrot.lane.b32.xlu0 %v1794, 96
  %v1802 = vpop.permute.xlu0 %1801
  %1803 = vrot.lane.b32.xlu0 %v1795, 96
  %v1804 = vpop.permute.xlu0 %1803
  %v1805 = vsel %vm587, %v1800, %v1802
  %v1806 = vsel %vm587, %v1802, %v1804
  %v1810 = vadd.f32 %v1786, %v1800
  %v1811 = vadd.f32 %v1787, %v1805
  %v1812 = vadd.f32 %v1788, %v1806
  %1813 = vset.pattern.permute.xlu0 32
  %1814 = vperm.xlu0 %1813, %v59
  %v1815 = vpop.permute.xlu0 %1814
  %v1817 = vmul.f32 %v1815, %v1513
  %v1818 = vmul.f32 %v1815, %v1514
  %v1819 = vmul.f32 %v1815, %v1515
  %1823 = vrot.lane.b32.xlu0 %v1817, 96
  %v1824 = vpop.permute.xlu0 %1823
  %1825 = vrot.lane.b32.xlu0 %v1818, 96
  %v1826 = vpop.permute.xlu0 %1825
  %1827 = vrot.lane.b32.xlu0 %v1819, 96
  %v1828 = vpop.permute.xlu0 %1827
  %v1829 = vsel %vm587, %v1824, %v1826
  %v1830 = vsel %vm587, %v1826, %v1828
  %v1834 = vadd.f32 %v1618, %v1824
  %v1835 = vadd.f32 %v1619, %v1829
  %v1836 = vadd.f32 %v1620, %v1830
  %1837 = vset.pattern.permute.xlu0 33
  %1838 = vperm.xlu0 %1837, %v59
  %v1839 = vpop.permute.xlu0 %1838
  %v1841 = vmul.f32 %v1839, %v1540
  %v1842 = vmul.f32 %v1839, %v1541
  %v1843 = vmul.f32 %v1839, %v1542
  %1847 = vrot.lane.b32.xlu0 %v1841, 96
  %v1848 = vpop.permute.xlu0 %1847
  %1849 = vrot.lane.b32.xlu0 %v1842, 96
  %v1850 = vpop.permute.xlu0 %1849
  %1851 = vrot.lane.b32.xlu0 %v1843, 96
  %v1852 = vpop.permute.xlu0 %1851
  %v1853 = vsel %vm587, %v1848, %v1850
  %v1854 = vsel %vm587, %v1850, %v1852
  %v1858 = vadd.f32 %v1834, %v1848
  %v1859 = vadd.f32 %v1835, %v1853
  %v1860 = vadd.f32 %v1836, %v1854
  %1861 = vset.pattern.permute.xlu0 34
  %1862 = vperm.xlu0 %1861, %v59
  %v1863 = vpop.permute.xlu0 %1862
  %v1865 = vmul.f32 %v1863, %v1567
  %v1866 = vmul.f32 %v1863, %v1568
  %v1867 = vmul.f32 %v1863, %v1569
  %1871 = vrot.lane.b32.xlu0 %v1865, 96
  %v1872 = vpop.permute.xlu0 %1871
  %1873 = vrot.lane.b32.xlu0 %v1866, 96
  %v1874 = vpop.permute.xlu0 %1873
  %1875 = vrot.lane.b32.xlu0 %v1867, 96
  %v1876 = vpop.permute.xlu0 %1875
  %v1877 = vsel %vm587, %v1872, %v1874
  %v1878 = vsel %vm587, %v1874, %v1876
  %v1882 = vadd.f32 %v1858, %v1872
  %v1883 = vadd.f32 %v1859, %v1877
  %v1884 = vadd.f32 %v1860, %v1878
  %1885 = vset.pattern.permute.xlu0 35
  %1886 = vperm.xlu0 %1885, %v59
  %v1887 = vpop.permute.xlu0 %1886
  %v1889 = vmul.f32 %v1887, %v1594
  %v1890 = vmul.f32 %v1887, %v1595
  %v1891 = vmul.f32 %v1887, %v1596
  %1895 = vrot.lane.b32.xlu0 %v1889, 96
  %v1896 = vpop.permute.xlu0 %1895
  %1897 = vrot.lane.b32.xlu0 %v1890, 96
  %v1898 = vpop.permute.xlu0 %1897
  %1899 = vrot.lane.b32.xlu0 %v1891, 96
  %v1900 = vpop.permute.xlu0 %1899
  %v1901 = vsel %vm587, %v1896, %v1898
  %v1902 = vsel %vm587, %v1898, %v1900
  %v1906 = vadd.f32 %v1882, %v1896
  %v1907 = vadd.f32 %v1883, %v1901
  %v1908 = vadd.f32 %v1884, %v1902
  %v1909 = vmul.f32 %v1714, %v863
  %v1910 = vmul.f32 %v1715, %v867
  %v1911 = vmul.f32 %v1716, %v865
  %1915 = vrot.lane.b32.xlu0 %v1909, 1
  %v1916 = vpop.permute.xlu0 %1915
  %1917 = vrot.lane.b32.xlu0 %v1910, 1
  %v1918 = vpop.permute.xlu0 %1917
  %1919 = vrot.lane.b32.xlu0 %v1911, 1
  %v1920 = vpop.permute.xlu0 %1919
  %v1921 = vsel %vm883, %v1916, %v1918
  %v1922 = vsel %vm883, %v1918, %v1920
  %v1926 = vadd.f32 %v1810, %v1916
  %v1927 = vadd.f32 %v1811, %v1921
  %v1928 = vadd.f32 %v1812, %v1922
  %v1929 = vmul.f32 %v1906, %v895
  %v1930 = vmul.f32 %v1907, %v899
  %v1931 = vmul.f32 %v1908, %v897
  %1935 = vrot.lane.b32.xlu0 %v1929, 127
  %v1936 = vpop.permute.xlu0 %1935
  %1937 = vrot.lane.b32.xlu0 %v1930, 127
  %v1938 = vpop.permute.xlu0 %1937
  %1939 = vrot.lane.b32.xlu0 %v1931, 127
  %v1940 = vpop.permute.xlu0 %1939
  %v1941 = vsel %vm915, %v1936, %v1938
  %v1942 = vsel %vm915, %v1938, %v1940
  %v1946 = vadd.f32 %v1926, %v1941
  %v1947 = vadd.f32 %v1927, %v1942
  %v1948 = vadd.f32 %v1928, %v1940
  %1952 = vrot.lane.b32.xlu0 %v1946, 16
  %v1953 = vpop.permute.xlu0 %1952
  %1954 = vrot.lane.b32.xlu0 %v1947, 16
  %v1955 = vpop.permute.xlu0 %1954
  %1956 = vrot.lane.b32.xlu0 %v1948, 16
  %v1957 = vpop.permute.xlu0 %1956
  %v1958 = vsel %vm933, %v1953, %v1955
  %v1959 = vsel %vm933, %v1955, %v1957
  %v1962 = vadd.f32 %v1958, %v1959
  %1963 = vadd.xlane.f32.xlu0 %v1962
  %v1964 = vpop.xlane.xlu0 %1963
  %v1965 = vmul.f32 %v1946, %v1946
  %v1966 = vmul.f32 %v1947, %v1947
  %v1967 = vmul.f32 %v1948, %v1948
  %1971 = vrot.lane.b32.xlu0 %v1965, 16
  %v1972 = vpop.permute.xlu0 %1971
  %1973 = vrot.lane.b32.xlu0 %v1966, 16
  %v1974 = vpop.permute.xlu0 %1973
  %1975 = vrot.lane.b32.xlu0 %v1967, 16
  %v1976 = vpop.permute.xlu0 %1975
  %v1977 = vsel %vm933, %v1972, %v1974
  %v1978 = vsel %vm933, %v1974, %v1976
  %v1981 = vadd.f32 %v1977, %v1978
  %1982 = vadd.xlane.f32.xlu0 %v1981
  %v1983 = vpop.xlane.xlu0 %1982
  %v1984 = vmul.f32 %v1964, 0.00390625
  %v1985 = vmul.f32 %v1983, 0.00390625
  %v1986 = vmul.f32 %v1984, %v1984
  %v1987 = vsub.f32 %v1985, %v1986
  %v1988 = vadd.f32 %v1987, 1e-05
  %v1989 = vrsqrt.pop %v1988
  %v1990 = vmul.f32 %v60, %v1989
  %1992 = vset.pattern.permute.xlu0 2
  %1993 = vperm.xlu0 %1992, %v1990
  %v1994 = vpop.permute.xlu0 %1993
  %v1996 = vmul.f32 %v1946, %v1994
  %v1997 = vmul.f32 %v1947, %v1994
  %v1998 = vmul.f32 %v1948, %v1994
  %v1999 = vmul.f32 %v1984, %v1990
  %2001 = vrot.lane.b32.xlu0 %v1999, 1
  %v2002 = vpop.permute.xlu0 %2001
  %v2004 = vsub.f32 %v60, %v2002
  %2006 = vset.pattern.permute.xlu0 3
  %2007 = vperm.xlu0 %2006, %v2004
  %v2008 = vpop.permute.xlu0 %2007
  %v2010 = vadd.f32 %v1996, %v2008
  %v2011 = vadd.f32 %v1997, %v2008
  %v2012 = vadd.f32 %v1998, %v2008
  %2016 = vrot.lane.b32.xlu0 %v2010, 16
  %v2017 = vpop.permute.xlu0 %2016
  %2018 = vrot.lane.b32.xlu0 %v2011, 16
  %v2019 = vpop.permute.xlu0 %2018
  %2020 = vrot.lane.b32.xlu0 %v2012, 16
  %v2021 = vpop.permute.xlu0 %2020
  %v2022 = vsel %vm933, %v2017, %v2019
  %v2023 = vsel %vm933, %v2019, %v2021
  %v2026 = vadd.f32 %v56, %v2022
  %v2027 = vadd.f32 %v57, %v2023
  %2028 = vst [vmem:[%s4] sm:$0xff] %v2026
  %2029 = vst [vmem:[%s4 + $0x8] sm:$0xff] %v2027
  // Predicated region
  $region18: #{resblock_forward.1} parent=0 // pred_check
    _
  $region19: #{resblock_forward.1} parent=0 // pred_check_branch
    %2031 = sbr.rel (0) target = $region21
  $region20: #{resblock_forward.1} parent=0 // pred_region
    _
  $region21: #{resblock_forward.1} parent=0 // pred_fallthru
    _
  // Predicated region
  $region22: #{resblock_forward.1} parent=0 // pred_check
    _
  $region23: #{resblock_forward.1} parent=0 // pred_check_branch
    %2033 = sbr.rel (0) target = $region25
  $region24: #{resblock_forward.1} parent=0 // pred_region
    _
  $region25: #{resblock_forward.1} parent=0 // pred_fallthru
    _

</llo_original>
